<compile_context>
chip_gen: v6e
topology: v6e:2x2x1
jax: 0.10.0
libtpu: 0.0.40
codegen_flags: <defaults>
</compile_context>

<pallas_src>
import jax
import jax.numpy as jnp
from jax.experimental import pallas as pl
from jax.experimental.pallas import tpu as pltpu


# ----------------------------------------------------------------------------
# Fused Pallas kernel: conv1 -> ReLU -> conv2 -> ReLU -> fc, whole batch in one
# grid step; all intermediates live in VMEM / vregs.
# ----------------------------------------------------------------------------
def _fused_kernel(x_ref, tsh_ref, g1_ref, b1_ref, g2_ref, b2_ref,
                  wbig_ref, mmask_ref, osum_ref, bsum_ref, fcb_ref,
                  y1_ref, y2_ref, fc_ref):
    f32 = jnp.float32
    act0 = x_ref[...]                               # (B*H, W*Cin) channel-last rows

    def conv(act, g_ref, b_ref):
        # 3x3 SAME conv == sum over row offsets oi of  T_oi @ (act @ G_oi);
        # G_oi folds the column shift + channel mixing, T_oi is batch-block-
        # diagonal (zero rows implement zero padding, no cross-image leakage).
        acc = jnp.dot(tsh_ref[0],
                      jnp.dot(act, g_ref[0], preferred_element_type=f32),
                      preferred_element_type=f32)
        for k in (1, 2):
            acc = acc + jnp.dot(
                tsh_ref[k],
                jnp.dot(act, g_ref[k], preferred_element_type=f32),
                preferred_element_type=f32)
        return acc + b_ref[...]

    y1 = conv(act0, g1_ref, b1_ref)                 # "conv1" hook (pre-ReLU)
    y1_ref[...] = y1
    r1 = jnp.maximum(y1, 0.0)

    y2 = conv(r1, g2_ref, b2_ref)                   # "conv2" hook (pre-ReLU)
    y2_ref[...] = y2
    r2 = jnp.maximum(y2, 0.0)

    # fc: reproduce PyTorch's NCHW flatten order via a per-h permuted weight,
    # an (h'==h) block mask, an output-channel fold and a per-batch row sum.
    # All plain 2D matmuls / elementwise ops -- no in-kernel reshape/transpose.
    t_fc = jnp.dot(r2, wbig_ref[...], preferred_element_type=f32)       # (B*H, H*F)
    part = jnp.dot(t_fc * mmask_ref[...], osum_ref[...],
                   preferred_element_type=f32)                          # (B*H, F)
    fc_ref[...] = jnp.dot(bsum_ref[...], part,
                          preferred_element_type=f32) + fcb_ref[...]    # (B, F)  "fc" hook


def _fused_net(kp, x2):
    """x2: (B*H, W*Cin) channel-last packed input. Returns (y1, y2, fc)."""
    BH, WC_in = x2.shape
    WC1 = kp["g1"].shape[-1]
    WC2 = kp["g2"].shape[-1]
    B = kp["bsum"].shape[0]
    FCOUT = kp["osum"].shape[-1]

    c3 = lambda i: (0, 0, 0)
    c2 = lambda i: (0, 0)

    return pl.pallas_call(
        _fused_kernel,
        out_shape=(
            jax.ShapeDtypeStruct((BH, WC1), jnp.float32),
            jax.ShapeDtypeStruct((BH, WC2), jnp.float32),
            jax.ShapeDtypeStruct((B, FCOUT), jnp.float32),
        ),
        grid_spec=pltpu.PrefetchScalarGridSpec(
            num_scalar_prefetch=0,
            grid=(1,),
            in_specs=[
                pl.BlockSpec((BH, WC_in), c2),          # packed input, whole batch
                pl.BlockSpec(kp["tshift"].shape, c3),   # (3, B*H, B*H) row-shift mats
                pl.BlockSpec(kp["g1"].shape, c3),       # (3, W*Cin, W*C1)
                pl.BlockSpec(kp["b1"].shape, c2),       # (1, W*C1)
                pl.BlockSpec(kp["g2"].shape, c3),       # (3, W*C1, W*C2)
                pl.BlockSpec(kp["b2"].shape, c2),       # (1, W*C2)
                pl.BlockSpec(kp["wbig"].shape, c2),     # (W*C2, H*FCOUT)
                pl.BlockSpec(kp["mmask"].shape, c2),    # (B*H, H*FCOUT)
                pl.BlockSpec(kp["osum"].shape, c2),     # (H*FCOUT, FCOUT)
                pl.BlockSpec(kp["bsum"].shape, c2),     # (B, B*H)
                pl.BlockSpec(kp["fcb"].shape, c2),      # (1, FCOUT)
            ],
            out_specs=[
                pl.BlockSpec((BH, WC1), c2),
                pl.BlockSpec((BH, WC2), c2),
                pl.BlockSpec((B, FCOUT), c2),
            ],
        ),
        compiler_params=pltpu.CompilerParams(
            dimension_semantics=("arbitrary",)),
    )(x2, kp["tshift"], kp["g1"], kp["b1"], kp["g2"], kp["b2"],
      kp["wbig"], kp["mmask"], kp["osum"], kp["bsum"], kp["fcb"])


# ----------------------------------------------------------------------------
# One-time parameter repacking (outside the forward path).
# ----------------------------------------------------------------------------
def init_params(key):
    k1, k2, k3, k4, k5, k6 = jax.random.split(key, 6)
    C_IN, C1, C2, H, W, FC_OUT = 4, 8, 8, 16, 16, 32
    return {
        "conv1_w": 0.1 * jax.random.normal(k1, (C1, C_IN, 3, 3), jnp.float32),
        "conv1_b": 0.1 * jax.random.normal(k2, (C1,), jnp.float32),
        "conv2_w": 0.1 * jax.random.normal(k3, (C2, C1, 3, 3), jnp.float32),
        "conv2_b": 0.1 * jax.random.normal(k4, (C2,), jnp.float32),
        "fc_w": 0.05 * jax.random.normal(k5, (FC_OUT, C2 * H * W), jnp.float32),
        "fc_b": 0.05 * jax.random.normal(k6, (FC_OUT,), jnp.float32),
    }


def prepare_kernel_params(params, B, H, W):
    f32 = jnp.float32
    w1 = params["conv1_w"].astype(f32)              # (C1, Cin, 3, 3) OIHW
    w2 = params["conv2_w"].astype(f32)              # (C2, C1, 3, 3)
    fc_w = params["fc_w"].astype(f32)               # (FCOUT, C2*H*W)
    C1 = w1.shape[0]
    C2 = w2.shape[0]
    FCOUT = fc_w.shape[0]

    def conv_right_mats(wt):
        cout, cin = wt.shape[0], wt.shape[1]
        mats = []
        for oi in (-1, 0, 1):                       # row offset
            g = jnp.zeros((W * cin, W * cout), f32)
            for oj in (-1, 0, 1):                   # col offset
                blk = wt[:, :, oi + 1, oj + 1].T            # (cin, cout)
                s = jnp.eye(W, W, k=-oj, dtype=f32)         # S[w', w]=1 iff w' = w + oj
                g = g + jnp.kron(s, blk)
            mats.append(g)
        return jnp.stack(mats)                      # (3, W*cin, W*cout)

    # Batch-block-diagonal row-shift mats: T_oi[bh, bh'] = 1 iff same image and
    # h' = h + oi (zero rows implement the zero padding).
    tshift = jnp.stack([jnp.kron(jnp.eye(B, dtype=f32),
                                 jnp.eye(H, H, k=oi, dtype=f32))
                        for oi in (-1, 0, 1)])      # (3, B*H, B*H)

    g1 = conv_right_mats(w1)
    g2 = conv_right_mats(w2)
    b1 = jnp.tile(params["conv1_b"].astype(f32), W).reshape(1, W * C1)
    b2 = jnp.tile(params["conv2_b"].astype(f32), W).reshape(1, W * C2)

    # fc weight permuted to the internal (h, w*C2+c) layout:
    # Wbig[w*C2+c, h*FCOUT+o] = fc_w[o, c*H*W + h*W + w]
    fcw4 = fc_w.reshape(FCOUT, C2, H, W)
    wbig = fcw4.transpose(3, 1, 2, 0).reshape(W * C2, H * FCOUT)
    mmask = jnp.tile(jnp.kron(jnp.eye(H, dtype=f32), jnp.ones((1, FCOUT), f32)),
                     (B, 1))                                             # (B*H, H*FCOUT)
    osum = jnp.kron(jnp.ones((H, 1), f32), jnp.eye(FCOUT, dtype=f32))    # (H*FCOUT, FCOUT)
    bsum = jnp.kron(jnp.eye(B, dtype=f32), jnp.ones((1, H), f32))        # (B, B*H)
    fcb = params["fc_b"].astype(f32).reshape(1, FCOUT)

    return dict(tshift=tshift, g1=g1, b1=b1, g2=g2, b2=b2,
                wbig=wbig, mmask=mmask, osum=osum, bsum=bsum, fcb=fcb)


# ----------------------------------------------------------------------------
# FeatureExtractor.forward equivalent: returns {layer_id: hooked_output}.
# ----------------------------------------------------------------------------
def feature_extractor_forward(kparams, x):
    B, Cin, H, W = x.shape
    # Pack NCHW input into the kernel's lane-dense channel-last row layout.
    x2 = x.transpose(0, 2, 3, 1).reshape(B * H, W * Cin)
    y1, y2, fc = _fused_net(kparams, x2)
    C1 = y1.shape[-1] // W
    C2 = y2.shape[-1] // W
    # Hooks are NCHW to match PyTorch exactly (tiny XLA transposes on ~8 KB).
    return {
        "conv1": y1.reshape(B, H, W, C1).transpose(0, 3, 1, 2),
        "conv2": y2.reshape(B, H, W, C2).transpose(0, 3, 1, 2),
        "fc": fc,
    }


# Pure-JAX reference for correctness checking.
def _reference_forward(params, x):
    with jax.default_matmul_precision("float32"):
        def conv_ref(x, w, b):
            y = jax.lax.conv_general_dilated(
                x, w, window_strides=(1, 1), padding="SAME",
                dimension_numbers=("NCHW", "OIHW", "NCHW"))
            return y + b[None, :, None, None]

        feats = {}
        c1 = conv_ref(x, params["conv1_w"], params["conv1_b"])
        feats["conv1"] = c1
        h1 = jnp.maximum(c1, 0.0)
        c2 = conv_ref(h1, params["conv2_w"], params["conv2_b"])
        feats["conv2"] = c2
        h2 = jnp.maximum(c2, 0.0)
        flat = h2.reshape(x.shape[0], -1)
        feats["fc"] = flat @ params["fc_w"].T + params["fc_b"]
    return feats


if __name__ == "__main__":
    key = jax.random.PRNGKey(0)
    x = jax.random.normal(key, (2, 4, 16, 16), jnp.float32)       # NCHW input
    params = init_params(jax.random.PRNGKey(42))

    B, Cin, H, W = x.shape
    # One-time weight repack (not in the hot path).
    kparams = prepare_kernel_params(params, B=B, H=H, W=W)

    fwd = jax.jit(feature_extractor_forward)
    feats = fwd(kparams, x)
    feats = jax.tree_util.tree_map(jax.block_until_ready, feats)

    ref = _reference_forward(params, x)
    for name in ("conv1", "conv2", "fc"):
        assert feats[name].shape == ref[name].shape, name
        err = float(jnp.max(jnp.abs(feats[name] - ref[name])))
        assert jnp.allclose(feats[name], ref[name], atol=5e-4, rtol=5e-3), (name, err)

    print("KERNEL_OK")
</pallas_src>

<mosaic_0001>
module attributes {stable_mosaic.version = 11 : i64} {
  func.func @_fused_kernel(%arg0: i32, %arg1: memref<32x64xf32, #tpu.memory_space<vmem>>, %arg2: memref<3x32x32xf32, #tpu.memory_space<vmem>>, %arg3: memref<3x64x128xf32, #tpu.memory_space<vmem>>, %arg4: memref<1x128xf32, #tpu.memory_space<vmem>>, %arg5: memref<3x128x128xf32, #tpu.memory_space<vmem>>, %arg6: memref<1x128xf32, #tpu.memory_space<vmem>>, %arg7: memref<128x512xf32, #tpu.memory_space<vmem>>, %arg8: memref<32x512xf32, #tpu.memory_space<vmem>>, %arg9: memref<512x32xf32, #tpu.memory_space<vmem>>, %arg10: memref<2x32xf32, #tpu.memory_space<vmem>>, %arg11: memref<1x32xf32, #tpu.memory_space<vmem>>, %arg12: memref<32x128xf32, #tpu.memory_space<vmem>>, %arg13: memref<32x128xf32, #tpu.memory_space<vmem>>, %arg14: memref<2x32xf32, #tpu.memory_space<vmem>>) attributes {dimension_semantics = [#tpu.dimension_semantics<arbitrary>], iteration_bounds = array<i64: 1>, scalar_prefetch = 0 : i64, scratch_operands = 0 : i64, tpu.core_type = #tpu.core_type<tc>, window_params = [{pipeline_mode = #tpu.pipeline_mode<synchronous>, transform_indices = @transform_0, window_bounds = array<i64: 32, 64>}, {pipeline_mode = #tpu.pipeline_mode<synchronous>, transform_indices = @transform_1, window_bounds = array<i64: 3, 32, 32>}, {pipeline_mode = #tpu.pipeline_mode<synchronous>, transform_indices = @transform_2, window_bounds = array<i64: 3, 64, 128>}, {pipeline_mode = #tpu.pipeline_mode<synchronous>, transform_indices = @transform_3, window_bounds = array<i64: 1, 128>}, {pipeline_mode = #tpu.pipeline_mode<synchronous>, transform_indices = @transform_4, window_bounds = array<i64: 3, 128, 128>}, {pipeline_mode = #tpu.pipeline_mode<synchronous>, transform_indices = @transform_5, window_bounds = array<i64: 1, 128>}, {pipeline_mode = #tpu.pipeline_mode<synchronous>, transform_indices = @transform_6, window_bounds = array<i64: 128, 512>}, {pipeline_mode = #tpu.pipeline_mode<synchronous>, transform_indices = @transform_7, window_bounds = array<i64: 32, 512>}, {pipeline_mode = #tpu.pipeline_mode<synchronous>, transform_indices = @transform_8, window_bounds = array<i64: 512, 32>}, {pipeline_mode = #tpu.pipeline_mode<synchronous>, transform_indices = @transform_9, window_bounds = array<i64: 2, 32>}, {pipeline_mode = #tpu.pipeline_mode<synchronous>, transform_indices = @transform_10, window_bounds = array<i64: 1, 32>}, {pipeline_mode = #tpu.pipeline_mode<synchronous>, transform_indices = @transform_11, window_bounds = array<i64: 32, 128>}, {pipeline_mode = #tpu.pipeline_mode<synchronous>, transform_indices = @transform_12, window_bounds = array<i64: 32, 128>}, {pipeline_mode = #tpu.pipeline_mode<synchronous>, transform_indices = @transform_13, window_bounds = array<i64: 2, 32>}]} {
    %c0 = arith.constant 0 : index
    %c0_0 = arith.constant 0 : index
    %0 = vector.load %arg1[%c0, %c0_0] : memref<32x64xf32, #tpu.memory_space<vmem>>, vector<32x64xf32>
    %c0_1 = arith.constant 0 : index
    %c0_2 = arith.constant 0 : index
    %c0_3 = arith.constant 0 : index
    %1 = vector.load %arg2[%c0_1, %c0_2, %c0_3] : memref<3x32x32xf32, #tpu.memory_space<vmem>>, vector<1x32x32xf32>
    %2 = vector.shape_cast %1 : vector<1x32x32xf32> to vector<32x32xf32>
    %c0_4 = arith.constant 0 : index
    %c0_5 = arith.constant 0 : index
    %c0_6 = arith.constant 0 : index
    %3 = vector.load %arg3[%c0_4, %c0_5, %c0_6] : memref<3x64x128xf32, #tpu.memory_space<vmem>>, vector<1x64x128xf32>
    %4 = vector.shape_cast %3 : vector<1x64x128xf32> to vector<64x128xf32>
    %cst = arith.constant dense<0.000000e+00> : vector<32x128xf32>
    %5 = tpu.matmul %0, %4, %cst {dimension_numbers = #tpu.dot_dimension_numbers<[1], [0], [0], [1], [0, 0, 1, 1], [], []>} : vector<32x64xf32>, vector<64x128xf32>, vector<32x128xf32> -> vector<32x128xf32>
    %cst_7 = arith.constant dense<0.000000e+00> : vector<32x128xf32>
    %6 = tpu.matmul %2, %5, %cst_7 {dimension_numbers = #tpu.dot_dimension_numbers<[1], [0], [0], [1], [0, 0, 1, 1], [], []>} : vector<32x32xf32>, vector<32x128xf32>, vector<32x128xf32> -> vector<32x128xf32>
    %c1 = arith.constant 1 : index
    %c0_8 = arith.constant 0 : index
    %c0_9 = arith.constant 0 : index
    %7 = vector.load %arg2[%c1, %c0_8, %c0_9] : memref<3x32x32xf32, #tpu.memory_space<vmem>>, vector<1x32x32xf32>
    %8 = vector.shape_cast %7 : vector<1x32x32xf32> to vector<32x32xf32>
    %c1_10 = arith.constant 1 : index
    %c0_11 = arith.constant 0 : index
    %c0_12 = arith.constant 0 : index
    %9 = vector.load %arg3[%c1_10, %c0_11, %c0_12] : memref<3x64x128xf32, #tpu.memory_space<vmem>>, vector<1x64x128xf32>
    %10 = vector.shape_cast %9 : vector<1x64x128xf32> to vector<64x128xf32>
    %cst_13 = arith.constant dense<0.000000e+00> : vector<32x128xf32>
    %11 = tpu.matmul %0, %10, %cst_13 {dimension_numbers = #tpu.dot_dimension_numbers<[1], [0], [0], [1], [0, 0, 1, 1], [], []>} : vector<32x64xf32>, vector<64x128xf32>, vector<32x128xf32> -> vector<32x128xf32>
    %cst_14 = arith.constant dense<0.000000e+00> : vector<32x128xf32>
    %12 = tpu.matmul %8, %11, %cst_14 {dimension_numbers = #tpu.dot_dimension_numbers<[1], [0], [0], [1], [0, 0, 1, 1], [], []>} : vector<32x32xf32>, vector<32x128xf32>, vector<32x128xf32> -> vector<32x128xf32>
    %13 = arith.addf %6, %12 : vector<32x128xf32>
    %c2 = arith.constant 2 : index
    %c0_15 = arith.constant 0 : index
    %c0_16 = arith.constant 0 : index
    %14 = vector.load %arg2[%c2, %c0_15, %c0_16] : memref<3x32x32xf32, #tpu.memory_space<vmem>>, vector<1x32x32xf32>
    %15 = vector.shape_cast %14 : vector<1x32x32xf32> to vector<32x32xf32>
    %c2_17 = arith.constant 2 : index
    %c0_18 = arith.constant 0 : index
    %c0_19 = arith.constant 0 : index
    %16 = vector.load %arg3[%c2_17, %c0_18, %c0_19] : memref<3x64x128xf32, #tpu.memory_space<vmem>>, vector<1x64x128xf32>
    %17 = vector.shape_cast %16 : vector<1x64x128xf32> to vector<64x128xf32>
    %cst_20 = arith.constant dense<0.000000e+00> : vector<32x128xf32>
    %18 = tpu.matmul %0, %17, %cst_20 {dimension_numbers = #tpu.dot_dimension_numbers<[1], [0], [0], [1], [0, 0, 1, 1], [], []>} : vector<32x64xf32>, vector<64x128xf32>, vector<32x128xf32> -> vector<32x128xf32>
    %cst_21 = arith.constant dense<0.000000e+00> : vector<32x128xf32>
    %19 = tpu.matmul %15, %18, %cst_21 {dimension_numbers = #tpu.dot_dimension_numbers<[1], [0], [0], [1], [0, 0, 1, 1], [], []>} : vector<32x32xf32>, vector<32x128xf32>, vector<32x128xf32> -> vector<32x128xf32>
    %20 = arith.addf %13, %19 : vector<32x128xf32>
    %c0_22 = arith.constant 0 : index
    %c0_23 = arith.constant 0 : index
    %21 = vector.load %arg4[%c0_22, %c0_23] : memref<1x128xf32, #tpu.memory_space<vmem>>, vector<1x128xf32>
    %22 = vector.broadcast %21 : vector<1x128xf32> to vector<32x128xf32>
    %23 = arith.addf %20, %22 : vector<32x128xf32>
    %c0_24 = arith.constant 0 : index
    %c0_25 = arith.constant 0 : index
    %24 = vector.load %arg12[%c0_24, %c0_25] : memref<32x128xf32, #tpu.memory_space<vmem>>, vector<32x128xf32>
    tpu.vector_store %arg12[%c0_24, %c0_25], %23 {strides = array<i32>} : memref<32x128xf32, #tpu.memory_space<vmem>>, vector<32x128xf32>,
    %cst_26 = arith.constant 0.000000e+00 : f32
    %25 = vector.broadcast %cst_26 : f32 to vector<32x128xf32>
    %26 = arith.maximumf %23, %25 : vector<32x128xf32>
    %c0_27 = arith.constant 0 : index
    %c0_28 = arith.constant 0 : index
    %c0_29 = arith.constant 0 : index
    %27 = vector.load %arg2[%c0_27, %c0_28, %c0_29] : memref<3x32x32xf32, #tpu.memory_space<vmem>>, vector<1x32x32xf32>
    %28 = vector.shape_cast %27 : vector<1x32x32xf32> to vector<32x32xf32>
    %c0_30 = arith.constant 0 : index
    %c0_31 = arith.constant 0 : index
    %c0_32 = arith.constant 0 : index
    %29 = vector.load %arg5[%c0_30, %c0_31, %c0_32] : memref<3x128x128xf32, #tpu.memory_space<vmem>>, vector<1x128x128xf32>
    %30 = vector.shape_cast %29 : vector<1x128x128xf32> to vector<128x128xf32>
    %cst_33 = arith.constant dense<0.000000e+00> : vector<32x128xf32>
    %31 = tpu.matmul %26, %30, %cst_33 {dimension_numbers = #tpu.dot_dimension_numbers<[1], [0], [0], [1], [0, 0, 1, 1], [], []>} : vector<32x128xf32>, vector<128x128xf32>, vector<32x128xf32> -> vector<32x128xf32>
    %cst_34 = arith.constant dense<0.000000e+00> : vector<32x128xf32>
    %32 = tpu.matmul %28, %31, %cst_34 {dimension_numbers = #tpu.dot_dimension_numbers<[1], [0], [0], [1], [0, 0, 1, 1], [], []>} : vector<32x32xf32>, vector<32x128xf32>, vector<32x128xf32> -> vector<32x128xf32>
    %c1_35 = arith.constant 1 : index
    %c0_36 = arith.constant 0 : index
    %c0_37 = arith.constant 0 : index
    %33 = vector.load %arg2[%c1_35, %c0_36, %c0_37] : memref<3x32x32xf32, #tpu.memory_space<vmem>>, vector<1x32x32xf32>
    %34 = vector.shape_cast %33 : vector<1x32x32xf32> to vector<32x32xf32>
    %c1_38 = arith.constant 1 : index
    %c0_39 = arith.constant 0 : index
    %c0_40 = arith.constant 0 : index
    %35 = vector.load %arg5[%c1_38, %c0_39, %c0_40] : memref<3x128x128xf32, #tpu.memory_space<vmem>>, vector<1x128x128xf32>
    %36 = vector.shape_cast %35 : vector<1x128x128xf32> to vector<128x128xf32>
    %cst_41 = arith.constant dense<0.000000e+00> : vector<32x128xf32>
    %37 = tpu.matmul %26, %36, %cst_41 {dimension_numbers = #tpu.dot_dimension_numbers<[1], [0], [0], [1], [0, 0, 1, 1], [], []>} : vector<32x128xf32>, vector<128x128xf32>, vector<32x128xf32> -> vector<32x128xf32>
    %cst_42 = arith.constant dense<0.000000e+00> : vector<32x128xf32>
    %38 = tpu.matmul %34, %37, %cst_42 {dimension_numbers = #tpu.dot_dimension_numbers<[1], [0], [0], [1], [0, 0, 1, 1], [], []>} : vector<32x32xf32>, vector<32x128xf32>, vector<32x128xf32> -> vector<32x128xf32>
    %39 = arith.addf %32, %38 : vector<32x128xf32>
    %c2_43 = arith.constant 2 : index
    %c0_44 = arith.constant 0 : index
    %c0_45 = arith.constant 0 : index
    %40 = vector.load %arg2[%c2_43, %c0_44, %c0_45] : memref<3x32x32xf32, #tpu.memory_space<vmem>>, vector<1x32x32xf32>
    %41 = vector.shape_cast %40 : vector<1x32x32xf32> to vector<32x32xf32>
    %c2_46 = arith.constant 2 : index
    %c0_47 = arith.constant 0 : index
    %c0_48 = arith.constant 0 : index
    %42 = vector.load %arg5[%c2_46, %c0_47, %c0_48] : memref<3x128x128xf32, #tpu.memory_space<vmem>>, vector<1x128x128xf32>
    %43 = vector.shape_cast %42 : vector<1x128x128xf32> to vector<128x128xf32>
    %cst_49 = arith.constant dense<0.000000e+00> : vector<32x128xf32>
    %44 = tpu.matmul %26, %43, %cst_49 {dimension_numbers = #tpu.dot_dimension_numbers<[1], [0], [0], [1], [0, 0, 1, 1], [], []>} : vector<32x128xf32>, vector<128x128xf32>, vector<32x128xf32> -> vector<32x128xf32>
    %cst_50 = arith.constant dense<0.000000e+00> : vector<32x128xf32>
    %45 = tpu.matmul %41, %44, %cst_50 {dimension_numbers = #tpu.dot_dimension_numbers<[1], [0], [0], [1], [0, 0, 1, 1], [], []>} : vector<32x32xf32>, vector<32x128xf32>, vector<32x128xf32> -> vector<32x128xf32>
    %46 = arith.addf %39, %45 : vector<32x128xf32>
    %c0_51 = arith.constant 0 : index
    %c0_52 = arith.constant 0 : index
    %47 = vector.load %arg6[%c0_51, %c0_52] : memref<1x128xf32, #tpu.memory_space<vmem>>, vector<1x128xf32>
    %48 = vector.broadcast %47 : vector<1x128xf32> to vector<32x128xf32>
    %49 = arith.addf %46, %48 : vector<32x128xf32>
    %c0_53 = arith.constant 0 : index
    %c0_54 = arith.constant 0 : index
    %50 = vector.load %arg13[%c0_53, %c0_54] : memref<32x128xf32, #tpu.memory_space<vmem>>, vector<32x128xf32>
    tpu.vector_store %arg13[%c0_53, %c0_54], %49 {strides = array<i32>} : memref<32x128xf32, #tpu.memory_space<vmem>>, vector<32x128xf32>,
    %cst_55 = arith.constant 0.000000e+00 : f32
    %51 = vector.broadcast %cst_55 : f32 to vector<32x128xf32>
    %52 = arith.maximumf %49, %51 : vector<32x128xf32>
    %c0_56 = arith.constant 0 : index
    %c0_57 = arith.constant 0 : index
    %53 = vector.load %arg7[%c0_56, %c0_57] : memref<128x512xf32, #tpu.memory_space<vmem>>, vector<128x512xf32>
    %cst_58 = arith.constant dense<0.000000e+00> : vector<32x512xf32>
    %54 = tpu.matmul %52, %53, %cst_58 {dimension_numbers = #tpu.dot_dimension_numbers<[1], [0], [0], [1], [0, 0, 1, 1], [], []>} : vector<32x128xf32>, vector<128x512xf32>, vector<32x512xf32> -> vector<32x512xf32>
    %c0_59 = arith.constant 0 : index
    %c0_60 = arith.constant 0 : index
    %55 = vector.load %arg8[%c0_59, %c0_60] : memref<32x512xf32, #tpu.memory_space<vmem>>, vector<32x512xf32>
    %56 = arith.mulf %54, %55 : vector<32x512xf32>
    %c0_61 = arith.constant 0 : index
    %c0_62 = arith.constant 0 : index
    %57 = vector.load %arg9[%c0_61, %c0_62] : memref<512x32xf32, #tpu.memory_space<vmem>>, vector<512x32xf32>
    %cst_63 = arith.constant dense<0.000000e+00> : vector<32x32xf32>
    %58 = tpu.matmul %56, %57, %cst_63 {dimension_numbers = #tpu.dot_dimension_numbers<[1], [0], [0], [1], [0, 0, 1, 1], [], []>} : vector<32x512xf32>, vector<512x32xf32>, vector<32x32xf32> -> vector<32x32xf32>
    %c0_64 = arith.constant 0 : index
    %c0_65 = arith.constant 0 : index
    %59 = vector.load %arg10[%c0_64, %c0_65] : memref<2x32xf32, #tpu.memory_space<vmem>>, vector<2x32xf32>
    %cst_66 = arith.constant dense<0.000000e+00> : vector<2x32xf32>
    %60 = tpu.matmul %59, %58, %cst_66 {dimension_numbers = #tpu.dot_dimension_numbers<[1], [0], [0], [1], [0, 0, 1, 1], [], []>} : vector<2x32xf32>, vector<32x32xf32>, vector<2x32xf32> -> vector<2x32xf32>
    %c0_67 = arith.constant 0 : index
    %c0_68 = arith.constant 0 : index
    %61 = vector.load %arg11[%c0_67, %c0_68] : memref<1x32xf32, #tpu.memory_space<vmem>>, vector<1x32xf32>
    %62 = vector.broadcast %61 : vector<1x32xf32> to vector<2x32xf32>
    %63 = arith.addf %60, %62 : vector<2x32xf32>
    %c0_69 = arith.constant 0 : index
    %c0_70 = arith.constant 0 : index
    %64 = vector.load %arg14[%c0_69, %c0_70] : memref<2x32xf32, #tpu.memory_space<vmem>>, vector<2x32xf32>
    tpu.vector_store %arg14[%c0_69, %c0_70], %63 {strides = array<i32>} : memref<2x32xf32, #tpu.memory_space<vmem>>, vector<2x32xf32>,
    return
  }
  func.func @transform_0(%arg0: i32) -> (i32, i32) {
    %c0_i32 = arith.constant 0 : i32
    %c0_i32_0 = arith.constant 0 : i32
    %c0_i32_1 = arith.constant 0 : i32
    return %c0_i32, %c0_i32_0 : i32, i32
  }
  func.func @transform_1(%arg0: i32) -> (i32, i32, i32) {
    %c0_i32 = arith.constant 0 : i32
    %c0_i32_0 = arith.constant 0 : i32
    %c0_i32_1 = arith.constant 0 : i32
    %c0_i32_2 = arith.constant 0 : i32
    return %c0_i32, %c0_i32_0, %c0_i32_1 : i32, i32, i32
  }
  func.func @transform_2(%arg0: i32) -> (i32, i32, i32) {
    %c0_i32 = arith.constant 0 : i32
    %c0_i32_0 = arith.constant 0 : i32
    %c0_i32_1 = arith.constant 0 : i32
    %c0_i32_2 = arith.constant 0 : i32
    return %c0_i32, %c0_i32_0, %c0_i32_1 : i32, i32, i32
  }
  func.func @transform_3(%arg0: i32) -> (i32, i32) {
    %c0_i32 = arith.constant 0 : i32
    %c0_i32_0 = arith.constant 0 : i32
    %c0_i32_1 = arith.constant 0 : i32
    return %c0_i32, %c0_i32_0 : i32, i32
  }
  func.func @transform_4(%arg0: i32) -> (i32, i32, i32) {
    %c0_i32 = arith.constant 0 : i32
    %c0_i32_0 = arith.constant 0 : i32
    %c0_i32_1 = arith.constant 0 : i32
    %c0_i32_2 = arith.constant 0 : i32
    return %c0_i32, %c0_i32_0, %c0_i32_1 : i32, i32, i32
  }
  func.func @transform_5(%arg0: i32) -> (i32, i32) {
    %c0_i32 = arith.constant 0 : i32
    %c0_i32_0 = arith.constant 0 : i32
    %c0_i32_1 = arith.constant 0 : i32
    return %c0_i32, %c0_i32_0 : i32, i32
  }
  func.func @transform_6(%arg0: i32) -> (i32, i32) {
    %c0_i32 = arith.constant 0 : i32
    %c0_i32_0 = arith.constant 0 : i32
    %c0_i32_1 = arith.constant 0 : i32
    return %c0_i32, %c0_i32_0 : i32, i32
  }
  func.func @transform_7(%arg0: i32) -> (i32, i32) {
    %c0_i32 = arith.constant 0 : i32
    %c0_i32_0 = arith.constant 0 : i32
    %c0_i32_1 = arith.constant 0 : i32
    return %c0_i32, %c0_i32_0 : i32, i32
  }
  func.func @transform_8(%arg0: i32) -> (i32, i32) {
    %c0_i32 = arith.constant 0 : i32
    %c0_i32_0 = arith.constant 0 : i32
    %c0_i32_1 = arith.constant 0 : i32
    return %c0_i32, %c0_i32_0 : i32, i32
  }
  func.func @transform_9(%arg0: i32) -> (i32, i32) {
    %c0_i32 = arith.constant 0 : i32
    %c0_i32_0 = arith.constant 0 : i32
    %c0_i32_1 = arith.constant 0 : i32
    return %c0_i32, %c0_i32_0 : i32, i32
  }
  func.func @transform_10(%arg0: i32) -> (i32, i32) {
    %c0_i32 = arith.constant 0 : i32
    %c0_i32_0 = arith.constant 0 : i32
    %c0_i32_1 = arith.constant 0 : i32
    return %c0_i32, %c0_i32_0 : i32, i32
  }
  func.func @transform_11(%arg0: i32) -> (i32, i32) {
    %c0_i32 = arith.constant 0 : i32
    %c0_i32_0 = arith.constant 0 : i32
    %c0_i32_1 = arith.constant 0 : i32
    return %c0_i32, %c0_i32_0 : i32, i32
  }
  func.func @transform_12(%arg0: i32) -> (i32, i32) {
    %c0_i32 = arith.constant 0 : i32
    %c0_i32_0 = arith.constant 0 : i32
    %c0_i32_1 = arith.constant 0 : i32
    return %c0_i32, %c0_i32_0 : i32, i32
  }
  func.func @transform_13(%arg0: i32) -> (i32, i32) {
    %c0_i32 = arith.constant 0 : i32
    %c0_i32_0 = arith.constant 0 : i32
    %c0_i32_1 = arith.constant 0 : i32
    return %c0_i32, %c0_i32_0 : i32, i32
  }
}

</mosaic_0001>

<llo_original>
// kernel: feature_extractor_forward.1
$region0: #{feature_extractor_forward.1}
  #allocation0 [shape = 'u32[]', space=smem, size = 0x4, offset = 0x4, fixed_abs, tag = 'smem constant byte address 0x4 - core index']
  #allocation1 [shape = 'u32[144,128]{1,0:T(1,128)}', space=vmem, size = 0x12000, scoped, tag = 'internal scratch']
  %s0 = inlined_call_operand.vmem [shape: f32[32,64], index: 0, kind: input, shape index: {}]
  %s1 = inlined_call_operand.vmem [shape: f32[3,32,32], index: 1, kind: input, shape index: {}]
  %s2 = inlined_call_operand.vmem [shape: f32[3,64,128], index: 2, kind: input, shape index: {}]
  %s3 = inlined_call_operand.hbm [shape: f32[1,128], index: 3, kind: input, shape index: {}]
  %s4 = inlined_call_operand.vmem [shape: f32[3,128,128], index: 4, kind: input, shape index: {}]
  %s5 = inlined_call_operand.hbm [shape: f32[1,128], index: 5, kind: input, shape index: {}]
  %s6 = inlined_call_operand.vmem [shape: f32[128,512], index: 6, kind: input, shape index: {}]
  %s7 = inlined_call_operand.hbm [shape: f32[32,512], index: 7, kind: input, shape index: {}]
  %s8 = inlined_call_operand.vmem [shape: f32[512,32], index: 8, kind: input, shape index: {}]
  %s9 = inlined_call_operand.hbm [shape: f32[2,32], index: 9, kind: input, shape index: {}]
  %s10 = inlined_call_operand.hbm [shape: f32[1,32], index: 10, kind: input, shape index: {}]
  %s11 = inlined_call_operand.vmem [shape: f32[32,128], index: 11, kind: output, shape index: {0}]
  %s12 = inlined_call_operand.vmem [shape: f32[32,128], index: 12, kind: output, shape index: {1}]
  %s13 = inlined_call_operand.hbm [shape: f32[2,32], index: 13, kind: output, shape index: {2}]
  %14 = xla_tuple %s11, %s12, %s13
  %s15 = sld [smem:[#allocation0]]
  $region90: #{feature_extractor_forward.1} parent=0
    _
  %s17 = ssub.s32 1, %s15
  %s18 = scalar_select 0, %s17, %s15
  $region1: #{feature_extractor_forward.1} parent=0
    #allocation2 [shape = 'u8[512]{0}', space=vmem, size = 0x400, scoped, tag = 'input window, operand 3, single buffered']
    #allocation3 [shape = 's32[1]{0}', space=sflag, size = 0x4, scoped, tag = 'scoped memory for feature_extractor_forward.1']
    #allocation4 [shape = 's32[1]{0}', space=sflag, size = 0x4, scoped, tag = 'scoped memory for feature_extractor_forward.1']
    #allocation5 [shape = 'u8[512]{0}', space=vmem, size = 0x400, scoped, tag = 'input window, operand 5, single buffered']
    #allocation6 [shape = 's32[1]{0}', space=sflag, size = 0x4, scoped, tag = 'scoped memory for feature_extractor_forward.1']
    #allocation7 [shape = 'u8[65536]{0}', space=vmem, size = 0x10000, scoped, tag = 'input window, operand 7, single buffered']
    #allocation8 [shape = 'u8[1024]{0}', space=vmem, size = 0x400, scoped, tag = 'input window, operand 9, single buffered']
    #allocation9 [shape = 's32[1]{0}', space=sflag, size = 0x4, scoped, tag = 'scoped memory for feature_extractor_forward.1']
    #allocation10 [shape = 'u8[512]{0}', space=vmem, size = 0x400, scoped, tag = 'input window, operand 10, single buffered']
    #allocation11 [shape = 'u8[1024]{0}', space=vmem, size = 0x400, scoped, tag = 'output window, operand 2, single buffered']
    %19 = vsyncpa [#allocation3], 0
    %20 = vsyncpa [#allocation6], 0
    %21 = vsyncpa [#allocation9], 0
    %22 = vsyncpa [#allocation4], 0
    // Predicated region
    $region2: #{feature_extractor_forward.1} parent=1 // pred_check
      _
    $region3: #{feature_extractor_forward.1} parent=1 // pred_check_branch
      %24 = sbr.rel (0) target = $region5
    $region4: #{feature_extractor_forward.1} parent=1 // pred_region
      _
    $region5: #{feature_extractor_forward.1} parent=1 // pred_fallthru
      _
    // Predicated region
    $region6: #{feature_extractor_forward.1} parent=1 // pred_check
      _
    $region7: #{feature_extractor_forward.1} parent=1 // pred_check_branch
      %26 = sbr.rel (0) target = $region9
    $region8: #{feature_extractor_forward.1} parent=1 // pred_region
      _
    $region9: #{feature_extractor_forward.1} parent=1 // pred_fallthru
      _
    // Predicated region
    $region10: #{feature_extractor_forward.1} parent=1 // pred_check
      _
    $region11: #{feature_extractor_forward.1} parent=1 // pred_check_branch
      %28 = sbr.rel (0) target = $region13
    $region12: #{feature_extractor_forward.1} parent=1 // pred_region
      _
    $region13: #{feature_extractor_forward.1} parent=1 // pred_fallthru
      _
    // Predicated region
    $region14: #{feature_extractor_forward.1} parent=1 // pred_check
      _
    $region15: #{feature_extractor_forward.1} parent=1 // pred_check_branch
      %30 = sbr.rel (0) target = $region17
    $region16: #{feature_extractor_forward.1} parent=1 // pred_region
      %s32 = ssub.s32 16, 16
      %33 = vsyncadd [#allocation3], %s32
      %s35 = sshll.u32 [#allocation2], 4
      %s36 = int_to_ptr.vmem [resolvable:$true] %s35
      %38 = dma.hbm_to_vmem [thread:$0]  %s3, 16, %s36, [#allocation3]
    $region17: #{feature_extractor_forward.1} parent=1 // pred_fallthru
      _
    // Predicated region
    $region18: #{feature_extractor_forward.1} parent=1 // pred_check
      _
    $region19: #{feature_extractor_forward.1} parent=1 // pred_check_branch
      %40 = sbr.rel (0) target = $region21
    $region20: #{feature_extractor_forward.1} parent=1 // pred_region
      _
    $region21: #{feature_extractor_forward.1} parent=1 // pred_fallthru
      _
    // Predicated region
    $region22: #{feature_extractor_forward.1} parent=1 // pred_check
      _
    $region23: #{feature_extractor_forward.1} parent=1 // pred_check_branch
      %42 = sbr.rel (0) target = $region25
    $region24: #{feature_extractor_forward.1} parent=1 // pred_region
      %s44 = ssub.s32 16, 16
      %45 = vsyncadd [#allocation6], %s44
      %s47 = sshll.u32 [#allocation5], 4
      %s48 = int_to_ptr.vmem [resolvable:$true] %s47
      %50 = dma.hbm_to_vmem [thread:$0]  %s5, 16, %s48, [#allocation6]
    $region25: #{feature_extractor_forward.1} parent=1 // pred_fallthru
      _
    // Predicated region
    $region26: #{feature_extractor_forward.1} parent=1 // pred_check
      _
    $region27: #{feature_extractor_forward.1} parent=1 // pred_check_branch
      %52 = sbr.rel (0) target = $region29
    $region28: #{feature_extractor_forward.1} parent=1 // pred_region
      _
    $region29: #{feature_extractor_forward.1} parent=1 // pred_fallthru
      _
    // Predicated region
    $region30: #{feature_extractor_forward.1} parent=1 // pred_check
      _
    $region31: #{feature_extractor_forward.1} parent=1 // pred_check_branch
      %54 = sbr.rel (0) target = $region33
    $region32: #{feature_extractor_forward.1} parent=1 // pred_region
      %s56 = ssub.s32 2048, 2048
      %57 = vsyncadd [#allocation6], %s56
      %s58 = sshll.u32 [#allocation7], 4
      %s59 = int_to_ptr.vmem [resolvable:$true] %s58
      %64 = dma.hbm_to_vmem [thread:$0]  %s7, 2048, %s59, [#allocation6], 512, 512, 32
    $region33: #{feature_extractor_forward.1} parent=1 // pred_fallthru
      _
    // Predicated region
    $region34: #{feature_extractor_forward.1} parent=1 // pred_check
      _
    $region35: #{feature_extractor_forward.1} parent=1 // pred_check_branch
      %66 = sbr.rel (0) target = $region37
    $region36: #{feature_extractor_forward.1} parent=1 // pred_region
      _
    $region37: #{feature_extractor_forward.1} parent=1 // pred_fallthru
      _
    // Predicated region
    $region38: #{feature_extractor_forward.1} parent=1 // pred_check
      _
    $region39: #{feature_extractor_forward.1} parent=1 // pred_check_branch
      %68 = sbr.rel (0) target = $region41
    $region40: #{feature_extractor_forward.1} parent=1 // pred_region
      %s70 = ssub.s32 32, 32
      %71 = vsyncadd [#allocation9], %s70
      %s73 = sshll.u32 [#allocation8], 4
      %s74 = int_to_ptr.vmem [resolvable:$true] %s73
      %76 = dma.hbm_to_vmem [thread:$0]  %s9, 32, %s74, [#allocation9]
    $region41: #{feature_extractor_forward.1} parent=1 // pred_fallthru
      _
    // Predicated region
    $region42: #{feature_extractor_forward.1} parent=1 // pred_check
      _
    $region43: #{feature_extractor_forward.1} parent=1 // pred_check_branch
      %78 = sbr.rel (0) target = $region45
    $region44: #{feature_extractor_forward.1} parent=1 // pred_region
      %s80 = ssub.s32 16, 16
      %81 = vsyncadd [#allocation9], %s80
      %s83 = sshll.u32 [#allocation10], 4
      %s84 = int_to_ptr.vmem [resolvable:$true] %s83
      %86 = dma.hbm_to_vmem [thread:$0]  %s10, 16, %s84, [#allocation9]
    $region45: #{feature_extractor_forward.1} parent=1 // pred_fallthru
      _
    // Predicated region
    $region46: #{feature_extractor_forward.1} parent=1 // pred_check
      _
    $region47: #{feature_extractor_forward.1} parent=1 // pred_check_branch
      %88 = sbr.rel (0) target = $region49
    $region48: #{feature_extractor_forward.1} parent=1 // pred_region
      %89 = dma.done [#allocation3], 16
    $region49: #{feature_extractor_forward.1} parent=1 // pred_fallthru
      _
    // Predicated region
    $region50: #{feature_extractor_forward.1} parent=1 // pred_check
      _
    $region51: #{feature_extractor_forward.1} parent=1 // pred_check_branch
      %91 = sbr.rel (0) target = $region53
    $region52: #{feature_extractor_forward.1} parent=1 // pred_region
      %92 = dma.done [#allocation6], 16
    $region53: #{feature_extractor_forward.1} parent=1 // pred_fallthru
      _
    // Predicated region
    $region54: #{feature_extractor_forward.1} parent=1 // pred_check
      _
    $region55: #{feature_extractor_forward.1} parent=1 // pred_check_branch
      %94 = sbr.rel (0) target = $region57
    $region56: #{feature_extractor_forward.1} parent=1 // pred_region
      %95 = dma.done [#allocation6], 2048
    $region57: #{feature_extractor_forward.1} parent=1 // pred_fallthru
      _
    // Predicated region
    $region58: #{feature_extractor_forward.1} parent=1 // pred_check
      _
    $region59: #{feature_extractor_forward.1} parent=1 // pred_check_branch
      %97 = sbr.rel (0) target = $region61
    $region60: #{feature_extractor_forward.1} parent=1 // pred_region
      %98 = dma.done [#allocation9], 32
    $region61: #{feature_extractor_forward.1} parent=1 // pred_fallthru
      _
    // Predicated region
    $region62: #{feature_extractor_forward.1} parent=1 // pred_check
      _
    $region63: #{feature_extractor_forward.1} parent=1 // pred_check_branch
      %100 = sbr.rel (0) target = $region65
    $region64: #{feature_extractor_forward.1} parent=1 // pred_region
      %101 = dma.done [#allocation9], 16
    $region65: #{feature_extractor_forward.1} parent=1 // pred_fallthru
      _
    %v102 = vld [vmem:[%s0] sm:$0xff]
    %v103 = vld [vmem:[%s0 + $0x8] sm:$0xff]
    %v104 = vld [vmem:[%s0 + $0x10] sm:$0xff]
    %v105 = vld [vmem:[%s0 + $0x18] sm:$0xff]
    %v106 = vld [vmem:[%s1] sm:$0xff]
    %v107 = vld [vmem:[%s1 + $0x8] sm:$0xff]
    %v108 = vld [vmem:[%s1 + $0x10] sm:$0xff]
    %v109 = vld [vmem:[%s1 + $0x18] sm:$0xff]
    %v110 = vld [vmem:[%s2] sm:$0xff]
    %v111 = vld [vmem:[%s2 + $0x8] sm:$0xff]
    %v112 = vld [vmem:[%s2 + $0x10] sm:$0xff]
    %v113 = vld [vmem:[%s2 + $0x18] sm:$0xff]
    %v114 = vld [vmem:[%s2 + $0x20] sm:$0xff]
    %v115 = vld [vmem:[%s2 + $0x28] sm:$0xff]
    %v116 = vld [vmem:[%s2 + $0x30] sm:$0xff]
    %v117 = vld [vmem:[%s2 + $0x38] sm:$0xff]
    %vm118 = vcmask 523264
    %v120 = vsel %vm118, %v102, 0
    %v123 = vsel %vm118, %v103, 0
    %v126 = vsel %vm118, %v104, 0
    %v129 = vsel %vm118, %v105, 0
    %131 = vmatprep.subr.mxu0 0.0
    %132 = vmatpush1.msra.mxu0 0.0
    %133 = vmatprep.subr.mxu0 0.0
    %134 = vmatpush1.msra.mxu0 0.0
    %135 = vmatprep.subr.mxu0 0.0
    %136 = vmatpush1.msra.mxu0 0.0
    %137 = vmatprep.subr.mxu0 0.0
    %138 = vmatpush1.msra.mxu0 0.0
    %139 = vmatprep.subr.mxu0 0.0
    %140 = vmatpush1.msra.mxu0 0.0
    %141 = vmatprep.subr.mxu0 0.0
    %142 = vmatpush1.msra.mxu0 0.0
    %143 = vmatprep.subr.mxu0 0.0
    %144 = vmatpush1.msra.mxu0 0.0
    %145 = vmatprep.subr.mxu0 0.0
    %146 = vmatpush1.msra.mxu0 0.0
    %147 = vmatprep.subr.mxu0 0.0
    %148 = vmatpush1.msra.mxu0 %v117
    %149 = vmatprep.subr.mxu0 0.0
    %150 = vmatpush1.msra.mxu0 %v116
    %151 = vmatprep.subr.mxu0 0.0
    %152 = vmatpush1.msra.mxu0 %v115
    %153 = vmatprep.subr.mxu0 0.0
    %154 = vmatpush1.msra.mxu0 %v114
    %155 = vmatprep.subr.mxu0 0.0
    %156 = vmatpush1.msra.mxu0 %v113
    %157 = vmatprep.subr.mxu0 0.0
    %158 = vmatpush1.msra.mxu0 %v112
    %159 = vmatprep.subr.mxu0 0.0
    %160 = vmatpush1.msra.mxu0 %v111
    %161 = vmatprep.subr.mxu0 0.0
    %162 = vmatpush1.msra.mxu0 %v110
    %163 = vmatprep.subr.mxu0 0.0
    %164 = vmatpush2.msra.mxu0 0.0
    %165 = vmatprep.subr.mxu0 0.0
    %166 = vmatpush2.msra.mxu0 0.0
    %167 = vmatprep.subr.mxu0 0.0
    %168 = vmatpush2.msra.mxu0 0.0
    %169 = vmatprep.subr.mxu0 0.0
    %170 = vmatpush2.msra.mxu0 0.0
    %171 = vmatprep.subr.mxu0 0.0
    %172 = vmatpush2.msra.mxu0 0.0
    %173 = vmatprep.subr.mxu0 0.0
    %174 = vmatpush2.msra.mxu0 0.0
    %175 = vmatprep.subr.mxu0 0.0
    %176 = vmatpush2.msra.mxu0 0.0
    %177 = vmatprep.subr.mxu0 0.0
    %178 = vmatpush2.msra.mxu0 0.0
    %179 = vmatprep.subr.mxu0 0.0
    %180 = vmatpush2.msra.mxu0 0.0
    %181 = vmatprep.subr.mxu0 0.0
    %182 = vmatpush2.msra.mxu0 0.0
    %183 = vmatprep.subr.mxu0 0.0
    %184 = vmatpush2.msra.mxu0 0.0
    %185 = vmatprep.subr.mxu0 0.0
    %186 = vmatpush2.msra.mxu0 0.0
    %187 = vmatprep.subr.mxu0 0.0
    %188 = vmatpush2.msra.mxu0 0.0
    %189 = vmatprep.subr.mxu0 0.0
    %190 = vmatpush2.msra.mxu0 0.0
    %191 = vmatprep.subr.mxu0 0.0
    %192 = vmatpush2.msra.mxu0 0.0
    %193 = vmatprep.subr.mxu0 0.0
    %194 = vmatpush2.msra.mxu0 0.0
    %195 = vmatprep.mubr.f32.mxu0 0.0
    %196 = vmatmul.mubr.f32.gmra.mxu0 %v120
    %v197 = vpop.f32.mrf.mxu0
    %v198 = vadd.f32 0.0, %v197
    %v199 = vpop.f32.mrf.mxu0
    %200 = vmatprep.mubr.f32.mxu0 0.0
    %201 = vmatmul.mubr.f32.gmra.mxu0 %v123
    %v202 = vpop.f32.mrf.mxu0
    %v203 = vadd.f32 0.0, %v202
    %v204 = vpop.f32.mrf.mxu0
    %205 = vmatprep.mubr.f32.mxu0 0.0
    %206 = vmatmul.mubr.f32.gmra.mxu0 %v126
    %v207 = vpop.f32.mrf.mxu0
    %v208 = vadd.f32 0.0, %v207
    %v209 = vpop.f32.mrf.mxu0
    %210 = vmatprep.mubr.f32.mxu0 0.0
    %211 = vmatmul.mubr.f32.gmra.mxu0 %v129
    %v212 = vpop.f32.mrf.mxu0
    %v213 = vadd.f32 0.0, %v212
    %v214 = vpop.f32.mrf.mxu0
    %215 = vdwg.mxu0
    %s216 = scalar_lea.vmem %s1, 32
    %v217 = vld [vmem:[%s216] sm:$0xff]
    %v218 = vld [vmem:[%s216 + $0x8] sm:$0xff]
    %v219 = vld [vmem:[%s216 + $0x10] sm:$0xff]
    %v220 = vld [vmem:[%s216 + $0x18] sm:$0xff]
    %s221 = scalar_lea.vmem %s2, 64
    %v222 = vld [vmem:[%s221] sm:$0xff]
    %v223 = vld [vmem:[%s221 + $0x8] sm:$0xff]
    %v224 = vld [vmem:[%s221 + $0x10] sm:$0xff]
    %v225 = vld [vmem:[%s221 + $0x18] sm:$0xff]
    %v226 = vld [vmem:[%s221 + $0x20] sm:$0xff]
    %v227 = vld [vmem:[%s221 + $0x28] sm:$0xff]
    %v228 = vld [vmem:[%s221 + $0x30] sm:$0xff]
    %v229 = vld [vmem:[%s221 + $0x38] sm:$0xff]
    %230 = vmatprep.subr.mxu0 0.0
    %231 = vmatpush1.msra.mxu0 0.0
    %232 = vmatprep.subr.mxu0 0.0
    %233 = vmatpush1.msra.mxu0 0.0
    %234 = vmatprep.subr.mxu0 0.0
    %235 = vmatpush1.msra.mxu0 0.0
    %236 = vmatprep.subr.mxu0 0.0
    %237 = vmatpush1.msra.mxu0 0.0
    %238 = vmatprep.subr.mxu0 0.0
    %239 = vmatpush1.msra.mxu0 0.0
    %240 = vmatprep.subr.mxu0 0.0
    %241 = vmatpush1.msra.mxu0 0.0
    %242 = vmatprep.subr.mxu0 0.0
    %243 = vmatpush1.msra.mxu0 0.0
    %244 = vmatprep.subr.mxu0 0.0
    %245 = vmatpush1.msra.mxu0 0.0
    %246 = vmatprep.subr.mxu0 0.0
    %247 = vmatpush1.msra.mxu0 %v229
    %248 = vmatprep.subr.mxu0 0.0
    %249 = vmatpush1.msra.mxu0 %v228
    %250 = vmatprep.subr.mxu0 0.0
    %251 = vmatpush1.msra.mxu0 %v227
    %252 = vmatprep.subr.mxu0 0.0
    %253 = vmatpush1.msra.mxu0 %v226
    %254 = vmatprep.subr.mxu0 0.0
    %255 = vmatpush1.msra.mxu0 %v225
    %256 = vmatprep.subr.mxu0 0.0
    %257 = vmatpush1.msra.mxu0 %v224
    %258 = vmatprep.subr.mxu0 0.0
    %259 = vmatpush1.msra.mxu0 %v223
    %260 = vmatprep.subr.mxu0 0.0
    %261 = vmatpush1.msra.mxu0 %v222
    %262 = vmatprep.subr.mxu0 0.0
    %263 = vmatpush2.msra.mxu0 0.0
    %264 = vmatprep.subr.mxu0 0.0
    %265 = vmatpush2.msra.mxu0 0.0
    %266 = vmatprep.subr.mxu0 0.0
    %267 = vmatpush2.msra.mxu0 0.0
    %268 = vmatprep.subr.mxu0 0.0
    %269 = vmatpush2.msra.mxu0 0.0
    %270 = vmatprep.subr.mxu0 0.0
    %271 = vmatpush2.msra.mxu0 0.0
    %272 = vmatprep.subr.mxu0 0.0
    %273 = vmatpush2.msra.mxu0 0.0
    %274 = vmatprep.subr.mxu0 0.0
    %275 = vmatpush2.msra.mxu0 0.0
    %276 = vmatprep.subr.mxu0 0.0
    %277 = vmatpush2.msra.mxu0 0.0
    %278 = vmatprep.subr.mxu0 0.0
    %279 = vmatpush2.msra.mxu0 0.0
    %280 = vmatprep.subr.mxu0 0.0
    %281 = vmatpush2.msra.mxu0 0.0
    %282 = vmatprep.subr.mxu0 0.0
    %283 = vmatpush2.msra.mxu0 0.0
    %284 = vmatprep.subr.mxu0 0.0
    %285 = vmatpush2.msra.mxu0 0.0
    %286 = vmatprep.subr.mxu0 0.0
    %287 = vmatpush2.msra.mxu0 0.0
    %288 = vmatprep.subr.mxu0 0.0
    %289 = vmatpush2.msra.mxu0 0.0
    %290 = vmatprep.subr.mxu0 0.0
    %291 = vmatpush2.msra.mxu0 0.0
    %292 = vmatprep.subr.mxu0 0.0
    %293 = vmatpush2.msra.mxu0 0.0
    %294 = vmatprep.mubr.f32.mxu0 0.0
    %295 = vmatmul.mubr.f32.gmra.mxu0 %v120
    %v296 = vpop.f32.mrf.mxu0
    %v297 = vadd.f32 0.0, %v296
    %v298 = vpop.f32.mrf.mxu0
    %299 = vmatprep.mubr.f32.mxu0 0.0
    %300 = vmatmul.mubr.f32.gmra.mxu0 %v123
    %v301 = vpop.f32.mrf.mxu0
    %v302 = vadd.f32 0.0, %v301
    %v303 = vpop.f32.mrf.mxu0
    %304 = vmatprep.mubr.f32.mxu0 0.0
    %305 = vmatmul.mubr.f32.gmra.mxu0 %v126
    %v306 = vpop.f32.mrf.mxu0
    %v307 = vadd.f32 0.0, %v306
    %v308 = vpop.f32.mrf.mxu0
    %309 = vmatprep.mubr.f32.mxu0 0.0
    %310 = vmatmul.mubr.f32.gmra.mxu0 %v129
    %v311 = vpop.f32.mrf.mxu0
    %v312 = vadd.f32 0.0, %v311
    %v313 = vpop.f32.mrf.mxu0
    %314 = vdwg.mxu0
    %vm315 = vcmask 261120
    %v317 = vsel %vm315, %v217, 0
    %v320 = vsel %vm315, %v218, 0
    %v323 = vsel %vm315, %v219, 0
    %v326 = vsel %vm315, %v220, 0
    %328 = vmatprep.subr.mxu0 0.0
    %329 = vmatpush1.msra.mxu0 0.0
    %330 = vmatprep.subr.mxu0 0.0
    %331 = vmatpush1.msra.mxu0 0.0
    %332 = vmatprep.subr.mxu0 0.0
    %333 = vmatpush1.msra.mxu0 0.0
    %334 = vmatprep.subr.mxu0 0.0
    %335 = vmatpush1.msra.mxu0 0.0
    %336 = vmatprep.subr.mxu0 0.0
    %337 = vmatpush1.msra.mxu0 0.0
    %338 = vmatprep.subr.mxu0 0.0
    %339 = vmatpush1.msra.mxu0 0.0
    %340 = vmatprep.subr.mxu0 0.0
    %341 = vmatpush1.msra.mxu0 0.0
    %342 = vmatprep.subr.mxu0 0.0
    %343 = vmatpush1.msra.mxu0 0.0
    %344 = vmatprep.subr.mxu0 0.0
    %345 = vmatpush1.msra.mxu0 0.0
    %346 = vmatprep.subr.mxu0 0.0
    %347 = vmatpush1.msra.mxu0 0.0
    %348 = vmatprep.subr.mxu0 0.0
    %349 = vmatpush1.msra.mxu0 0.0
    %350 = vmatprep.subr.mxu0 0.0
    %351 = vmatpush1.msra.mxu0 0.0
    %352 = vmatprep.subr.mxu0 0.0
    %353 = vmatpush1.msra.mxu0 %v312
    %354 = vmatprep.subr.mxu0 0.0
    %355 = vmatpush1.msra.mxu0 %v307
    %356 = vmatprep.subr.mxu0 0.0
    %357 = vmatpush1.msra.mxu0 %v302
    %358 = vmatprep.subr.mxu0 0.0
    %359 = vmatpush1.msra.mxu0 %v297
    %360 = vmatprep.subr.mxu0 0.0
    %361 = vmatpush2.msra.mxu0 0.0
    %362 = vmatprep.subr.mxu0 0.0
    %363 = vmatpush2.msra.mxu0 0.0
    %364 = vmatprep.subr.mxu0 0.0
    %365 = vmatpush2.msra.mxu0 0.0
    %366 = vmatprep.subr.mxu0 0.0
    %367 = vmatpush2.msra.mxu0 0.0
    %368 = vmatprep.subr.mxu0 0.0
    %369 = vmatpush2.msra.mxu0 0.0
    %370 = vmatprep.subr.mxu0 0.0
    %371 = vmatpush2.msra.mxu0 0.0
    %372 = vmatprep.subr.mxu0 0.0
    %373 = vmatpush2.msra.mxu0 0.0
    %374 = vmatprep.subr.mxu0 0.0
    %375 = vmatpush2.msra.mxu0 0.0
    %376 = vmatprep.subr.mxu0 0.0
    %377 = vmatpush2.msra.mxu0 0.0
    %378 = vmatprep.subr.mxu0 0.0
    %379 = vmatpush2.msra.mxu0 0.0
    %380 = vmatprep.subr.mxu0 0.0
    %381 = vmatpush2.msra.mxu0 0.0
    %382 = vmatprep.subr.mxu0 0.0
    %383 = vmatpush2.msra.mxu0 0.0
    %384 = vmatprep.subr.mxu0 0.0
    %385 = vmatpush2.msra.mxu0 0.0
    %386 = vmatprep.subr.mxu0 0.0
    %387 = vmatpush2.msra.mxu0 0.0
    %388 = vmatprep.subr.mxu0 0.0
    %389 = vmatpush2.msra.mxu0 0.0
    %390 = vmatprep.subr.mxu0 0.0
    %391 = vmatpush2.msra.mxu0 0.0
    %392 = vmatprep.mubr.f32.mxu0 0.0
    %393 = vmatmul.mubr.f32.gmra.mxu0 %v317
    %v394 = vpop.f32.mrf.mxu0
    %v395 = vadd.f32 0.0, %v394
    %v396 = vpop.f32.mrf.mxu0
    %397 = vmatprep.mubr.f32.mxu0 0.0
    %398 = vmatmul.mubr.f32.gmra.mxu0 %v320
    %v399 = vpop.f32.mrf.mxu0
    %v400 = vadd.f32 0.0, %v399
    %v401 = vpop.f32.mrf.mxu0
    %402 = vmatprep.mubr.f32.mxu0 0.0
    %403 = vmatmul.mubr.f32.gmra.mxu0 %v323
    %v404 = vpop.f32.mrf.mxu0
    %v405 = vadd.f32 0.0, %v404
    %v406 = vpop.f32.mrf.mxu0
    %407 = vmatprep.mubr.f32.mxu0 0.0
    %408 = vmatmul.mubr.f32.gmra.mxu0 %v326
    %v409 = vpop.f32.mrf.mxu0
    %v410 = vadd.f32 0.0, %v409
    %v411 = vpop.f32.mrf.mxu0
    %412 = vdwg.mxu0
    %v414 = vsel %vm315, %v106, 0
    %v417 = vsel %vm315, %v107, 0
    %v420 = vsel %vm315, %v108, 0
    %v423 = vsel %vm315, %v109, 0
    %425 = vmatprep.subr.mxu0 0.0
    %426 = vmatpush1.msra.mxu0 0.0
    %427 = vmatprep.subr.mxu0 0.0
    %428 = vmatpush1.msra.mxu0 0.0
    %429 = vmatprep.subr.mxu0 0.0
    %430 = vmatpush1.msra.mxu0 0.0
    %431 = vmatprep.subr.mxu0 0.0
    %432 = vmatpush1.msra.mxu0 0.0
    %433 = vmatprep.subr.mxu0 0.0
    %434 = vmatpush1.msra.mxu0 0.0
    %435 = vmatprep.subr.mxu0 0.0
    %436 = vmatpush1.msra.mxu0 0.0
    %437 = vmatprep.subr.mxu0 0.0
    %438 = vmatpush1.msra.mxu0 0.0
    %439 = vmatprep.subr.mxu0 0.0
    %440 = vmatpush1.msra.mxu0 0.0
    %441 = vmatprep.subr.mxu0 0.0
    %442 = vmatpush1.msra.mxu0 0.0
    %443 = vmatprep.subr.mxu0 0.0
    %444 = vmatpush1.msra.mxu0 0.0
    %445 = vmatprep.subr.mxu0 0.0
    %446 = vmatpush1.msra.mxu0 0.0
    %447 = vmatprep.subr.mxu0 0.0
    %448 = vmatpush1.msra.mxu0 0.0
    %449 = vmatprep.subr.mxu0 0.0
    %450 = vmatpush1.msra.mxu0 %v213
    %451 = vmatprep.subr.mxu0 0.0
    %452 = vmatpush1.msra.mxu0 %v208
    %453 = vmatprep.subr.mxu0 0.0
    %454 = vmatpush1.msra.mxu0 %v203
    %455 = vmatprep.subr.mxu0 0.0
    %456 = vmatpush1.msra.mxu0 %v198
    %457 = vmatprep.subr.mxu0 0.0
    %458 = vmatpush2.msra.mxu0 0.0
    %459 = vmatprep.subr.mxu0 0.0
    %460 = vmatpush2.msra.mxu0 0.0
    %461 = vmatprep.subr.mxu0 0.0
    %462 = vmatpush2.msra.mxu0 0.0
    %463 = vmatprep.subr.mxu0 0.0
    %464 = vmatpush2.msra.mxu0 0.0
    %465 = vmatprep.subr.mxu0 0.0
    %466 = vmatpush2.msra.mxu0 0.0
    %467 = vmatprep.subr.mxu0 0.0
    %468 = vmatpush2.msra.mxu0 0.0
    %469 = vmatprep.subr.mxu0 0.0
    %470 = vmatpush2.msra.mxu0 0.0
    %471 = vmatprep.subr.mxu0 0.0
    %472 = vmatpush2.msra.mxu0 0.0
    %473 = vmatprep.subr.mxu0 0.0
    %474 = vmatpush2.msra.mxu0 0.0
    %475 = vmatprep.subr.mxu0 0.0
    %476 = vmatpush2.msra.mxu0 0.0
    %477 = vmatprep.subr.mxu0 0.0
    %478 = vmatpush2.msra.mxu0 0.0
    %479 = vmatprep.subr.mxu0 0.0
    %480 = vmatpush2.msra.mxu0 0.0
    %481 = vmatprep.subr.mxu0 0.0
    %482 = vmatpush2.msra.mxu0 0.0
    %483 = vmatprep.subr.mxu0 0.0
    %484 = vmatpush2.msra.mxu0 0.0
    %485 = vmatprep.subr.mxu0 0.0
    %486 = vmatpush2.msra.mxu0 0.0
    %487 = vmatprep.subr.mxu0 0.0
    %488 = vmatpush2.msra.mxu0 0.0
    %489 = vmatprep.mubr.f32.mxu0 0.0
    %490 = vmatmul.mubr.f32.gmra.mxu0 %v414
    %v491 = vpop.f32.mrf.mxu0
    %v492 = vadd.f32 %v395, %v491
    %v493 = vpop.f32.mrf.mxu0
    %494 = vmatprep.mubr.f32.mxu0 0.0
    %495 = vmatmul.mubr.f32.gmra.mxu0 %v417
    %v496 = vpop.f32.mrf.mxu0
    %v497 = vadd.f32 %v400, %v496
    %v498 = vpop.f32.mrf.mxu0
    %499 = vmatprep.mubr.f32.mxu0 0.0
    %500 = vmatmul.mubr.f32.gmra.mxu0 %v420
    %v501 = vpop.f32.mrf.mxu0
    %v502 = vadd.f32 %v405, %v501
    %v503 = vpop.f32.mrf.mxu0
    %504 = vmatprep.mubr.f32.mxu0 0.0
    %505 = vmatmul.mubr.f32.gmra.mxu0 %v423
    %v506 = vpop.f32.mrf.mxu0
    %v507 = vadd.f32 %v410, %v506
    %v508 = vpop.f32.mrf.mxu0
    %509 = vdwg.mxu0
    %s510 = scalar_lea.vmem %s1, 64
    %v511 = vld [vmem:[%s510] sm:$0xff]
    %v512 = vld [vmem:[%s510 + $0x8] sm:$0xff]
    %v513 = vld [vmem:[%s510 + $0x10] sm:$0xff]
    %v514 = vld [vmem:[%s510 + $0x18] sm:$0xff]
    %s515 = scalar_lea.vmem %s2, 128
    %v516 = vld [vmem:[%s515] sm:$0xff]
    %v517 = vld [vmem:[%s515 + $0x8] sm:$0xff]
    %v518 = vld [vmem:[%s515 + $0x10] sm:$0xff]
    %v519 = vld [vmem:[%s515 + $0x18] sm:$0xff]
    %v520 = vld [vmem:[%s515 + $0x20] sm:$0xff]
    %v521 = vld [vmem:[%s515 + $0x28] sm:$0xff]
    %v522 = vld [vmem:[%s515 + $0x30] sm:$0xff]
    %v523 = vld [vmem:[%s515 + $0x38] sm:$0xff]
    %524 = vmatprep.subr.mxu0 0.0
    %525 = vmatpush1.msra.mxu0 0.0
    %526 = vmatprep.subr.mxu0 0.0
    %527 = vmatpush1.msra.mxu0 0.0
    %528 = vmatprep.subr.mxu0 0.0
    %529 = vmatpush1.msra.mxu0 0.0
    %530 = vmatprep.subr.mxu0 0.0
    %531 = vmatpush1.msra.mxu0 0.0
    %532 = vmatprep.subr.mxu0 0.0
    %533 = vmatpush1.msra.mxu0 0.0
    %534 = vmatprep.subr.mxu0 0.0
    %535 = vmatpush1.msra.mxu0 0.0
    %536 = vmatprep.subr.mxu0 0.0
    %537 = vmatpush1.msra.mxu0 0.0
    %538 = vmatprep.subr.mxu0 0.0
    %539 = vmatpush1.msra.mxu0 0.0
    %540 = vmatprep.subr.mxu0 0.0
    %541 = vmatpush1.msra.mxu0 %v523
    %542 = vmatprep.subr.mxu0 0.0
    %543 = vmatpush1.msra.mxu0 %v522
    %544 = vmatprep.subr.mxu0 0.0
    %545 = vmatpush1.msra.mxu0 %v521
    %546 = vmatprep.subr.mxu0 0.0
    %547 = vmatpush1.msra.mxu0 %v520
    %548 = vmatprep.subr.mxu0 0.0
    %549 = vmatpush1.msra.mxu0 %v519
    %550 = vmatprep.subr.mxu0 0.0
    %551 = vmatpush1.msra.mxu0 %v518
    %552 = vmatprep.subr.mxu0 0.0
    %553 = vmatpush1.msra.mxu0 %v517
    %554 = vmatprep.subr.mxu0 0.0
    %555 = vmatpush1.msra.mxu0 %v516
    %556 = vmatprep.subr.mxu0 0.0
    %557 = vmatpush2.msra.mxu0 0.0
    %558 = vmatprep.subr.mxu0 0.0
    %559 = vmatpush2.msra.mxu0 0.0
    %560 = vmatprep.subr.mxu0 0.0
    %561 = vmatpush2.msra.mxu0 0.0
    %562 = vmatprep.subr.mxu0 0.0
    %563 = vmatpush2.msra.mxu0 0.0
    %564 = vmatprep.subr.mxu0 0.0
    %565 = vmatpush2.msra.mxu0 0.0
    %566 = vmatprep.subr.mxu0 0.0
    %567 = vmatpush2.msra.mxu0 0.0
    %568 = vmatprep.subr.mxu0 0.0
    %569 = vmatpush2.msra.mxu0 0.0
    %570 = vmatprep.subr.mxu0 0.0
    %571 = vmatpush2.msra.mxu0 0.0
    %572 = vmatprep.subr.mxu0 0.0
    %573 = vmatpush2.msra.mxu0 0.0
    %574 = vmatprep.subr.mxu0 0.0
    %575 = vmatpush2.msra.mxu0 0.0
    %576 = vmatprep.subr.mxu0 0.0
    %577 = vmatpush2.msra.mxu0 0.0
    %578 = vmatprep.subr.mxu0 0.0
    %579 = vmatpush2.msra.mxu0 0.0
    %580 = vmatprep.subr.mxu0 0.0
    %581 = vmatpush2.msra.mxu0 0.0
    %582 = vmatprep.subr.mxu0 0.0
    %583 = vmatpush2.msra.mxu0 0.0
    %584 = vmatprep.subr.mxu0 0.0
    %585 = vmatpush2.msra.mxu0 0.0
    %586 = vmatprep.subr.mxu0 0.0
    %587 = vmatpush2.msra.mxu0 0.0
    %588 = vmatprep.mubr.f32.mxu0 0.0
    %589 = vmatmul.mubr.f32.gmra.mxu0 %v120
    %v590 = vpop.f32.mrf.mxu0
    %v591 = vadd.f32 0.0, %v590
    %v592 = vpop.f32.mrf.mxu0
    %593 = vmatprep.mubr.f32.mxu0 0.0
    %594 = vmatmul.mubr.f32.gmra.mxu0 %v123
    %v595 = vpop.f32.mrf.mxu0
    %v596 = vadd.f32 0.0, %v595
    %v597 = vpop.f32.mrf.mxu0
    %598 = vmatprep.mubr.f32.mxu0 0.0
    %599 = vmatmul.mubr.f32.gmra.mxu0 %v126
    %v600 = vpop.f32.mrf.mxu0
    %v601 = vadd.f32 0.0, %v600
    %v602 = vpop.f32.mrf.mxu0
    %603 = vmatprep.mubr.f32.mxu0 0.0
    %604 = vmatmul.mubr.f32.gmra.mxu0 %v129
    %v605 = vpop.f32.mrf.mxu0
    %v606 = vadd.f32 0.0, %v605
    %v607 = vpop.f32.mrf.mxu0
    %608 = vdwg.mxu0
    %v610 = vsel %vm315, %v511, 0
    %v613 = vsel %vm315, %v512, 0
    %v616 = vsel %vm315, %v513, 0
    %v619 = vsel %vm315, %v514, 0
    %621 = vmatprep.subr.mxu0 0.0
    %622 = vmatpush1.msra.mxu0 0.0
    %623 = vmatprep.subr.mxu0 0.0
    %624 = vmatpush1.msra.mxu0 0.0
    %625 = vmatprep.subr.mxu0 0.0
    %626 = vmatpush1.msra.mxu0 0.0
    %627 = vmatprep.subr.mxu0 0.0
    %628 = vmatpush1.msra.mxu0 0.0
    %629 = vmatprep.subr.mxu0 0.0
    %630 = vmatpush1.msra.mxu0 0.0
    %631 = vmatprep.subr.mxu0 0.0
    %632 = vmatpush1.msra.mxu0 0.0
    %633 = vmatprep.subr.mxu0 0.0
    %634 = vmatpush1.msra.mxu0 0.0
    %635 = vmatprep.subr.mxu0 0.0
    %636 = vmatpush1.msra.mxu0 0.0
    %637 = vmatprep.subr.mxu0 0.0
    %638 = vmatpush1.msra.mxu0 0.0
    %639 = vmatprep.subr.mxu0 0.0
    %640 = vmatpush1.msra.mxu0 0.0
    %641 = vmatprep.subr.mxu0 0.0
    %642 = vmatpush1.msra.mxu0 0.0
    %643 = vmatprep.subr.mxu0 0.0
    %644 = vmatpush1.msra.mxu0 0.0
    %645 = vmatprep.subr.mxu0 0.0
    %646 = vmatpush1.msra.mxu0 %v606
    %647 = vmatprep.subr.mxu0 0.0
    %648 = vmatpush1.msra.mxu0 %v601
    %649 = vmatprep.subr.mxu0 0.0
    %650 = vmatpush1.msra.mxu0 %v596
    %651 = vmatprep.subr.mxu0 0.0
    %652 = vmatpush1.msra.mxu0 %v591
    %653 = vmatprep.subr.mxu0 0.0
    %654 = vmatpush2.msra.mxu0 0.0
    %655 = vmatprep.subr.mxu0 0.0
    %656 = vmatpush2.msra.mxu0 0.0
    %657 = vmatprep.subr.mxu0 0.0
    %658 = vmatpush2.msra.mxu0 0.0
    %659 = vmatprep.subr.mxu0 0.0
    %660 = vmatpush2.msra.mxu0 0.0
    %661 = vmatprep.subr.mxu0 0.0
    %662 = vmatpush2.msra.mxu0 0.0
    %663 = vmatprep.subr.mxu0 0.0
    %664 = vmatpush2.msra.mxu0 0.0
    %665 = vmatprep.subr.mxu0 0.0
    %666 = vmatpush2.msra.mxu0 0.0
    %667 = vmatprep.subr.mxu0 0.0
    %668 = vmatpush2.msra.mxu0 0.0
    %669 = vmatprep.subr.mxu0 0.0
    %670 = vmatpush2.msra.mxu0 0.0
    %671 = vmatprep.subr.mxu0 0.0
    %672 = vmatpush2.msra.mxu0 0.0
    %673 = vmatprep.subr.mxu0 0.0
    %674 = vmatpush2.msra.mxu0 0.0
    %675 = vmatprep.subr.mxu0 0.0
    %676 = vmatpush2.msra.mxu0 0.0
    %677 = vmatprep.subr.mxu0 0.0
    %678 = vmatpush2.msra.mxu0 0.0
    %679 = vmatprep.subr.mxu0 0.0
    %680 = vmatpush2.msra.mxu0 0.0
    %681 = vmatprep.subr.mxu0 0.0
    %682 = vmatpush2.msra.mxu0 0.0
    %683 = vmatprep.subr.mxu0 0.0
    %684 = vmatpush2.msra.mxu0 0.0
    %685 = vmatprep.mubr.f32.mxu0 0.0
    %686 = vmatmul.mubr.f32.gmra.mxu0 %v610
    %v687 = vpop.f32.mrf.mxu0
    %v688 = vadd.f32 0.0, %v687
    %v689 = vpop.f32.mrf.mxu0
    %690 = vmatprep.mubr.f32.mxu0 0.0
    %691 = vmatmul.mubr.f32.gmra.mxu0 %v613
    %v692 = vpop.f32.mrf.mxu0
    %v693 = vadd.f32 0.0, %v692
    %v694 = vpop.f32.mrf.mxu0
    %695 = vmatprep.mubr.f32.mxu0 0.0
    %696 = vmatmul.mubr.f32.gmra.mxu0 %v616
    %v697 = vpop.f32.mrf.mxu0
    %v698 = vadd.f32 0.0, %v697
    %v699 = vpop.f32.mrf.mxu0
    %700 = vmatprep.mubr.f32.mxu0 0.0
    %701 = vmatmul.mubr.f32.gmra.mxu0 %v619
    %v702 = vpop.f32.mrf.mxu0
    %v703 = vadd.f32 0.0, %v702
    %v704 = vpop.f32.mrf.mxu0
    %705 = vdwg.mxu0
    %v706 = vadd.f32 %v492, %v688
    %v707 = vadd.f32 %v497, %v693
    %v708 = vadd.f32 %v502, %v698
    %v709 = vadd.f32 %v507, %v703
    %v710 = vld [vmem:[#allocation2] sm:$0x1]
    %v712 = vlaneseq
    %v713 = vshrl.u32 %v712, 7
    %v714 = vsub.s32 0, %v713
    %v715 = vrot.slane %v710, %v714
    %v717 = vadd.f32 %v706, %v715
    %v718 = vadd.f32 %v707, %v715
    %v719 = vadd.f32 %v708, %v715
    %v720 = vadd.f32 %v709, %v715
    %721 = vst [vmem:[%s11] sm:$0xff] %v717
    %722 = vst [vmem:[%s11 + $0x8] sm:$0xff] %v718
    %723 = vst [vmem:[%s11 + $0x10] sm:$0xff] %v719
    %724 = vst [vmem:[%s11 + $0x18] sm:$0xff] %v720
    %v725 = vmax.f32 %v717, 0.0
    %v726 = vmax.f32 %v718, 0.0
    %v727 = vmax.f32 %v719, 0.0
    %v728 = vmax.f32 %v720, 0.0
    %v729 = vld [vmem:[%s1] sm:$0xff]
    %v730 = vld [vmem:[%s1 + $0x8] sm:$0xff]
    %v731 = vld [vmem:[%s1 + $0x10] sm:$0xff]
    %v732 = vld [vmem:[%s1 + $0x18] sm:$0xff]
    %v733 = vld [vmem:[%s4] sm:$0xff]
    %v734 = vld [vmem:[%s4 + $0x8] sm:$0xff]
    %v735 = vld [vmem:[%s4 + $0x10] sm:$0xff]
    %v736 = vld [vmem:[%s4 + $0x18] sm:$0xff]
    %v737 = vld [vmem:[%s4 + $0x20] sm:$0xff]
    %v738 = vld [vmem:[%s4 + $0x28] sm:$0xff]
    %v739 = vld [vmem:[%s4 + $0x30] sm:$0xff]
    %v740 = vld [vmem:[%s4 + $0x38] sm:$0xff]
    %v741 = vld [vmem:[%s4 + $0x40] sm:$0xff]
    %v742 = vld [vmem:[%s4 + $0x48] sm:$0xff]
    %v743 = vld [vmem:[%s4 + $0x50] sm:$0xff]
    %v744 = vld [vmem:[%s4 + $0x58] sm:$0xff]
    %v745 = vld [vmem:[%s4 + $0x60] sm:$0xff]
    %v746 = vld [vmem:[%s4 + $0x68] sm:$0xff]
    %v747 = vld [vmem:[%s4 + $0x70] sm:$0xff]
    %v748 = vld [vmem:[%s4 + $0x78] sm:$0xff]
    %749 = vmatprep.subr.mxu0 0.0
    %750 = vmatpush1.msra.mxu0 %v748
    %751 = vmatprep.subr.mxu0 0.0
    %752 = vmatpush1.msra.mxu0 %v747
    %753 = vmatprep.subr.mxu0 0.0
    %754 = vmatpush1.msra.mxu0 %v746
    %755 = vmatprep.subr.mxu0 0.0
    %756 = vmatpush1.msra.mxu0 %v745
    %757 = vmatprep.subr.mxu0 0.0
    %758 = vmatpush1.msra.mxu0 %v744
    %759 = vmatprep.subr.mxu0 0.0
    %760 = vmatpush1.msra.mxu0 %v743
    %761 = vmatprep.subr.mxu0 0.0
    %762 = vmatpush1.msra.mxu0 %v742
    %763 = vmatprep.subr.mxu0 0.0
    %764 = vmatpush1.msra.mxu0 %v741
    %765 = vmatprep.subr.mxu0 0.0
    %766 = vmatpush1.msra.mxu0 %v740
    %767 = vmatprep.subr.mxu0 0.0
    %768 = vmatpush1.msra.mxu0 %v739
    %769 = vmatprep.subr.mxu0 0.0
    %770 = vmatpush1.msra.mxu0 %v738
    %771 = vmatprep.subr.mxu0 0.0
    %772 = vmatpush1.msra.mxu0 %v737
    %773 = vmatprep.subr.mxu0 0.0
    %774 = vmatpush1.msra.mxu0 %v736
    %775 = vmatprep.subr.mxu0 0.0
    %776 = vmatpush1.msra.mxu0 %v735
    %777 = vmatprep.subr.mxu0 0.0
    %778 = vmatpush1.msra.mxu0 %v734
    %779 = vmatprep.subr.mxu0 0.0
    %780 = vmatpush1.msra.mxu0 %v733
    %781 = vmatprep.subr.mxu0 0.0
    %782 = vmatpush2.msra.mxu0 0.0
    %783 = vmatprep.subr.mxu0 0.0
    %784 = vmatpush2.msra.mxu0 0.0
    %785 = vmatprep.subr.mxu0 0.0
    %786 = vmatpush2.msra.mxu0 0.0
    %787 = vmatprep.subr.mxu0 0.0
    %788 = vmatpush2.msra.mxu0 0.0
    %789 = vmatprep.subr.mxu0 0.0
    %790 = vmatpush2.msra.mxu0 0.0
    %791 = vmatprep.subr.mxu0 0.0
    %792 = vmatpush2.msra.mxu0 0.0
    %793 = vmatprep.subr.mxu0 0.0
    %794 = vmatpush2.msra.mxu0 0.0
    %795 = vmatprep.subr.mxu0 0.0
    %796 = vmatpush2.msra.mxu0 0.0
    %797 = vmatprep.subr.mxu0 0.0
    %798 = vmatpush2.msra.mxu0 0.0
    %799 = vmatprep.subr.mxu0 0.0
    %800 = vmatpush2.msra.mxu0 0.0
    %801 = vmatprep.subr.mxu0 0.0
    %802 = vmatpush2.msra.mxu0 0.0
    %803 = vmatprep.subr.mxu0 0.0
    %804 = vmatpush2.msra.mxu0 0.0
    %805 = vmatprep.subr.mxu0 0.0
    %806 = vmatpush2.msra.mxu0 0.0
    %807 = vmatprep.subr.mxu0 0.0
    %808 = vmatpush2.msra.mxu0 0.0
    %809 = vmatprep.subr.mxu0 0.0
    %810 = vmatpush2.msra.mxu0 0.0
    %811 = vmatprep.subr.mxu0 0.0
    %812 = vmatpush2.msra.mxu0 0.0
    %813 = vmatprep.mubr.f32.mxu0 0.0
    %814 = vmatmul.mubr.f32.gmra.mxu0 %v725
    %v815 = vpop.f32.mrf.mxu0
    %v816 = vadd.f32 0.0, %v815
    %v817 = vpop.f32.mrf.mxu0
    %818 = vmatprep.mubr.f32.mxu0 0.0
    %819 = vmatmul.mubr.f32.gmra.mxu0 %v726
    %v820 = vpop.f32.mrf.mxu0
    %v821 = vadd.f32 0.0, %v820
    %v822 = vpop.f32.mrf.mxu0
    %823 = vmatprep.mubr.f32.mxu0 0.0
    %824 = vmatmul.mubr.f32.gmra.mxu0 %v727
    %v825 = vpop.f32.mrf.mxu0
    %v826 = vadd.f32 0.0, %v825
    %v827 = vpop.f32.mrf.mxu0
    %828 = vmatprep.mubr.f32.mxu0 0.0
    %829 = vmatmul.mubr.f32.gmra.mxu0 %v728
    %v830 = vpop.f32.mrf.mxu0
    %v831 = vadd.f32 0.0, %v830
    %v832 = vpop.f32.mrf.mxu0
    %833 = vdwg.mxu0
    %v834 = vld [vmem:[%s216] sm:$0xff]
    %v835 = vld [vmem:[%s216 + $0x8] sm:$0xff]
    %v836 = vld [vmem:[%s216 + $0x10] sm:$0xff]
    %v837 = vld [vmem:[%s216 + $0x18] sm:$0xff]
    %s838 = scalar_lea.vmem %s4, 128
    %v839 = vld [vmem:[%s838] sm:$0xff]
    %v840 = vld [vmem:[%s838 + $0x8] sm:$0xff]
    %v841 = vld [vmem:[%s838 + $0x10] sm:$0xff]
    %v842 = vld [vmem:[%s838 + $0x18] sm:$0xff]
    %v843 = vld [vmem:[%s838 + $0x20] sm:$0xff]
    %v844 = vld [vmem:[%s838 + $0x28] sm:$0xff]
    %v845 = vld [vmem:[%s838 + $0x30] sm:$0xff]
    %v846 = vld [vmem:[%s838 + $0x38] sm:$0xff]
    %v847 = vld [vmem:[%s838 + $0x40] sm:$0xff]
    %v848 = vld [vmem:[%s838 + $0x48] sm:$0xff]
    %v849 = vld [vmem:[%s838 + $0x50] sm:$0xff]
    %v850 = vld [vmem:[%s838 + $0x58] sm:$0xff]
    %v851 = vld [vmem:[%s838 + $0x60] sm:$0xff]
    %v852 = vld [vmem:[%s838 + $0x68] sm:$0xff]
    %v853 = vld [vmem:[%s838 + $0x70] sm:$0xff]
    %v854 = vld [vmem:[%s838 + $0x78] sm:$0xff]
    %855 = vmatprep.subr.mxu0 0.0
    %856 = vmatpush1.msra.mxu0 %v854
    %857 = vmatprep.subr.mxu0 0.0
    %858 = vmatpush1.msra.mxu0 %v853
    %859 = vmatprep.subr.mxu0 0.0
    %860 = vmatpush1.msra.mxu0 %v852
    %861 = vmatprep.subr.mxu0 0.0
    %862 = vmatpush1.msra.mxu0 %v851
    %863 = vmatprep.subr.mxu0 0.0
    %864 = vmatpush1.msra.mxu0 %v850
    %865 = vmatprep.subr.mxu0 0.0
    %866 = vmatpush1.msra.mxu0 %v849
    %867 = vmatprep.subr.mxu0 0.0
    %868 = vmatpush1.msra.mxu0 %v848
    %869 = vmatprep.subr.mxu0 0.0
    %870 = vmatpush1.msra.mxu0 %v847
    %871 = vmatprep.subr.mxu0 0.0
    %872 = vmatpush1.msra.mxu0 %v846
    %873 = vmatprep.subr.mxu0 0.0
    %874 = vmatpush1.msra.mxu0 %v845
    %875 = vmatprep.subr.mxu0 0.0
    %876 = vmatpush1.msra.mxu0 %v844
    %877 = vmatprep.subr.mxu0 0.0
    %878 = vmatpush1.msra.mxu0 %v843
    %879 = vmatprep.subr.mxu0 0.0
    %880 = vmatpush1.msra.mxu0 %v842
    %881 = vmatprep.subr.mxu0 0.0
    %882 = vmatpush1.msra.mxu0 %v841
    %883 = vmatprep.subr.mxu0 0.0
    %884 = vmatpush1.msra.mxu0 %v840
    %885 = vmatprep.subr.mxu0 0.0
    %886 = vmatpush1.msra.mxu0 %v839
    %887 = vmatprep.subr.mxu0 0.0
    %888 = vmatpush2.msra.mxu0 0.0
    %889 = vmatprep.subr.mxu0 0.0
    %890 = vmatpush2.msra.mxu0 0.0
    %891 = vmatprep.subr.mxu0 0.0
    %892 = vmatpush2.msra.mxu0 0.0
    %893 = vmatprep.subr.mxu0 0.0
    %894 = vmatpush2.msra.mxu0 0.0
    %895 = vmatprep.subr.mxu0 0.0
    %896 = vmatpush2.msra.mxu0 0.0
    %897 = vmatprep.subr.mxu0 0.0
    %898 = vmatpush2.msra.mxu0 0.0
    %899 = vmatprep.subr.mxu0 0.0
    %900 = vmatpush2.msra.mxu0 0.0
    %901 = vmatprep.subr.mxu0 0.0
    %902 = vmatpush2.msra.mxu0 0.0
    %903 = vmatprep.subr.mxu0 0.0
    %904 = vmatpush2.msra.mxu0 0.0
    %905 = vmatprep.subr.mxu0 0.0
    %906 = vmatpush2.msra.mxu0 0.0
    %907 = vmatprep.subr.mxu0 0.0
    %908 = vmatpush2.msra.mxu0 0.0
    %909 = vmatprep.subr.mxu0 0.0
    %910 = vmatpush2.msra.mxu0 0.0
    %911 = vmatprep.subr.mxu0 0.0
    %912 = vmatpush2.msra.mxu0 0.0
    %913 = vmatprep.subr.mxu0 0.0
    %914 = vmatpush2.msra.mxu0 0.0
    %915 = vmatprep.subr.mxu0 0.0
    %916 = vmatpush2.msra.mxu0 0.0
    %917 = vmatprep.subr.mxu0 0.0
    %918 = vmatpush2.msra.mxu0 0.0
    %919 = vmatprep.mubr.f32.mxu0 0.0
    %920 = vmatmul.mubr.f32.gmra.mxu0 %v725
    %v921 = vpop.f32.mrf.mxu0
    %v922 = vadd.f32 0.0, %v921
    %v923 = vpop.f32.mrf.mxu0
    %924 = vmatprep.mubr.f32.mxu0 0.0
    %925 = vmatmul.mubr.f32.gmra.mxu0 %v726
    %v926 = vpop.f32.mrf.mxu0
    %v927 = vadd.f32 0.0, %v926
    %v928 = vpop.f32.mrf.mxu0
    %929 = vmatprep.mubr.f32.mxu0 0.0
    %930 = vmatmul.mubr.f32.gmra.mxu0 %v727
    %v931 = vpop.f32.mrf.mxu0
    %v932 = vadd.f32 0.0, %v931
    %v933 = vpop.f32.mrf.mxu0
    %934 = vmatprep.mubr.f32.mxu0 0.0
    %935 = vmatmul.mubr.f32.gmra.mxu0 %v728
    %v936 = vpop.f32.mrf.mxu0
    %v937 = vadd.f32 0.0, %v936
    %v938 = vpop.f32.mrf.mxu0
    %939 = vdwg.mxu0
    %v941 = vsel %vm315, %v834, 0
    %v944 = vsel %vm315, %v835, 0
    %v947 = vsel %vm315, %v836, 0
    %v950 = vsel %vm315, %v837, 0
    %952 = vmatprep.subr.mxu0 0.0
    %953 = vmatpush1.msra.mxu0 0.0
    %954 = vmatprep.subr.mxu0 0.0
    %955 = vmatpush1.msra.mxu0 0.0
    %956 = vmatprep.subr.mxu0 0.0
    %957 = vmatpush1.msra.mxu0 0.0
    %958 = vmatprep.subr.mxu0 0.0
    %959 = vmatpush1.msra.mxu0 0.0
    %960 = vmatprep.subr.mxu0 0.0
    %961 = vmatpush1.msra.mxu0 0.0
    %962 = vmatprep.subr.mxu0 0.0
    %963 = vmatpush1.msra.mxu0 0.0
    %964 = vmatprep.subr.mxu0 0.0
    %965 = vmatpush1.msra.mxu0 0.0
    %966 = vmatprep.subr.mxu0 0.0
    %967 = vmatpush1.msra.mxu0 0.0
    %968 = vmatprep.subr.mxu0 0.0
    %969 = vmatpush1.msra.mxu0 0.0
    %970 = vmatprep.subr.mxu0 0.0
    %971 = vmatpush1.msra.mxu0 0.0
    %972 = vmatprep.subr.mxu0 0.0
    %973 = vmatpush1.msra.mxu0 0.0
    %974 = vmatprep.subr.mxu0 0.0
    %975 = vmatpush1.msra.mxu0 0.0
    %976 = vmatprep.subr.mxu0 0.0
    %977 = vmatpush1.msra.mxu0 %v937
    %978 = vmatprep.subr.mxu0 0.0
    %979 = vmatpush1.msra.mxu0 %v932
    %980 = vmatprep.subr.mxu0 0.0
    %981 = vmatpush1.msra.mxu0 %v927
    %982 = vmatprep.subr.mxu0 0.0
    %983 = vmatpush1.msra.mxu0 %v922
    %984 = vmatprep.subr.mxu0 0.0
    %985 = vmatpush2.msra.mxu0 0.0
    %986 = vmatprep.subr.mxu0 0.0
    %987 = vmatpush2.msra.mxu0 0.0
    %988 = vmatprep.subr.mxu0 0.0
    %989 = vmatpush2.msra.mxu0 0.0
    %990 = vmatprep.subr.mxu0 0.0
    %991 = vmatpush2.msra.mxu0 0.0
    %992 = vmatprep.subr.mxu0 0.0
    %993 = vmatpush2.msra.mxu0 0.0
    %994 = vmatprep.subr.mxu0 0.0
    %995 = vmatpush2.msra.mxu0 0.0
    %996 = vmatprep.subr.mxu0 0.0
    %997 = vmatpush2.msra.mxu0 0.0
    %998 = vmatprep.subr.mxu0 0.0
    %999 = vmatpush2.msra.mxu0 0.0
    %1000 = vmatprep.subr.mxu0 0.0
    %1001 = vmatpush2.msra.mxu0 0.0
    %1002 = vmatprep.subr.mxu0 0.0
    %1003 = vmatpush2.msra.mxu0 0.0
    %1004 = vmatprep.subr.mxu0 0.0
    %1005 = vmatpush2.msra.mxu0 0.0
    %1006 = vmatprep.subr.mxu0 0.0
    %1007 = vmatpush2.msra.mxu0 0.0
    %1008 = vmatprep.subr.mxu0 0.0
    %1009 = vmatpush2.msra.mxu0 0.0
    %1010 = vmatprep.subr.mxu0 0.0
    %1011 = vmatpush2.msra.mxu0 0.0
    %1012 = vmatprep.subr.mxu0 0.0
    %1013 = vmatpush2.msra.mxu0 0.0
    %1014 = vmatprep.subr.mxu0 0.0
    %1015 = vmatpush2.msra.mxu0 0.0
    %1016 = vmatprep.mubr.f32.mxu0 0.0
    %1017 = vmatmul.mubr.f32.gmra.mxu0 %v941
    %v1018 = vpop.f32.mrf.mxu0
    %v1019 = vadd.f32 0.0, %v1018
    %v1020 = vpop.f32.mrf.mxu0
    %1021 = vmatprep.mubr.f32.mxu0 0.0
    %1022 = vmatmul.mubr.f32.gmra.mxu0 %v944
    %v1023 = vpop.f32.mrf.mxu0
    %v1024 = vadd.f32 0.0, %v1023
    %v1025 = vpop.f32.mrf.mxu0
    %1026 = vmatprep.mubr.f32.mxu0 0.0
    %1027 = vmatmul.mubr.f32.gmra.mxu0 %v947
    %v1028 = vpop.f32.mrf.mxu0
    %v1029 = vadd.f32 0.0, %v1028
    %v1030 = vpop.f32.mrf.mxu0
    %1031 = vmatprep.mubr.f32.mxu0 0.0
    %1032 = vmatmul.mubr.f32.gmra.mxu0 %v950
    %v1033 = vpop.f32.mrf.mxu0
    %v1034 = vadd.f32 0.0, %v1033
    %v1035 = vpop.f32.mrf.mxu0
    %1036 = vdwg.mxu0
    %v1038 = vsel %vm315, %v729, 0
    %v1041 = vsel %vm315, %v730, 0
    %v1044 = vsel %vm315, %v731, 0
    %v1047 = vsel %vm315, %v732, 0
    %1049 = vmatprep.subr.mxu0 0.0
    %1050 = vmatpush1.msra.mxu0 0.0
    %1051 = vmatprep.subr.mxu0 0.0
    %1052 = vmatpush1.msra.mxu0 0.0
    %1053 = vmatprep.subr.mxu0 0.0
    %1054 = vmatpush1.msra.mxu0 0.0
    %1055 = vmatprep.subr.mxu0 0.0
    %1056 = vmatpush1.msra.mxu0 0.0
    %1057 = vmatprep.subr.mxu0 0.0
    %1058 = vmatpush1.msra.mxu0 0.0
    %1059 = vmatprep.subr.mxu0 0.0
    %1060 = vmatpush1.msra.mxu0 0.0
    %1061 = vmatprep.subr.mxu0 0.0
    %1062 = vmatpush1.msra.mxu0 0.0
    %1063 = vmatprep.subr.mxu0 0.0
    %1064 = vmatpush1.msra.mxu0 0.0
    %1065 = vmatprep.subr.mxu0 0.0
    %1066 = vmatpush1.msra.mxu0 0.0
    %1067 = vmatprep.subr.mxu0 0.0
    %1068 = vmatpush1.msra.mxu0 0.0
    %1069 = vmatprep.subr.mxu0 0.0
    %1070 = vmatpush1.msra.mxu0 0.0
    %1071 = vmatprep.subr.mxu0 0.0
    %1072 = vmatpush1.msra.mxu0 0.0
    %1073 = vmatprep.subr.mxu0 0.0
    %1074 = vmatpush1.msra.mxu0 %v831
    %1075 = vmatprep.subr.mxu0 0.0
    %1076 = vmatpush1.msra.mxu0 %v826
    %1077 = vmatprep.subr.mxu0 0.0
    %1078 = vmatpush1.msra.mxu0 %v821
    %1079 = vmatprep.subr.mxu0 0.0
    %1080 = vmatpush1.msra.mxu0 %v816
    %1081 = vmatprep.subr.mxu0 0.0
    %1082 = vmatpush2.msra.mxu0 0.0
    %1083 = vmatprep.subr.mxu0 0.0
    %1084 = vmatpush2.msra.mxu0 0.0
    %1085 = vmatprep.subr.mxu0 0.0
    %1086 = vmatpush2.msra.mxu0 0.0
    %1087 = vmatprep.subr.mxu0 0.0
    %1088 = vmatpush2.msra.mxu0 0.0
    %1089 = vmatprep.subr.mxu0 0.0
    %1090 = vmatpush2.msra.mxu0 0.0
    %1091 = vmatprep.subr.mxu0 0.0
    %1092 = vmatpush2.msra.mxu0 0.0
    %1093 = vmatprep.subr.mxu0 0.0
    %1094 = vmatpush2.msra.mxu0 0.0
    %1095 = vmatprep.subr.mxu0 0.0
    %1096 = vmatpush2.msra.mxu0 0.0
    %1097 = vmatprep.subr.mxu0 0.0
    %1098 = vmatpush2.msra.mxu0 0.0
    %1099 = vmatprep.subr.mxu0 0.0
    %1100 = vmatpush2.msra.mxu0 0.0
    %1101 = vmatprep.subr.mxu0 0.0
    %1102 = vmatpush2.msra.mxu0 0.0
    %1103 = vmatprep.subr.mxu0 0.0
    %1104 = vmatpush2.msra.mxu0 0.0
    %1105 = vmatprep.subr.mxu0 0.0
    %1106 = vmatpush2.msra.mxu0 0.0
    %1107 = vmatprep.subr.mxu0 0.0
    %1108 = vmatpush2.msra.mxu0 0.0
    %1109 = vmatprep.subr.mxu0 0.0
    %1110 = vmatpush2.msra.mxu0 0.0
    %1111 = vmatprep.subr.mxu0 0.0
    %1112 = vmatpush2.msra.mxu0 0.0
    %1113 = vmatprep.mubr.f32.mxu0 0.0
    %1114 = vmatmul.mubr.f32.gmra.mxu0 %v1038
    %v1115 = vpop.f32.mrf.mxu0
    %v1116 = vadd.f32 %v1019, %v1115
    %v1117 = vpop.f32.mrf.mxu0
    %1118 = vmatprep.mubr.f32.mxu0 0.0
    %1119 = vmatmul.mubr.f32.gmra.mxu0 %v1041
    %v1120 = vpop.f32.mrf.mxu0
    %v1121 = vadd.f32 %v1024, %v1120
    %v1122 = vpop.f32.mrf.mxu0
    %1123 = vmatprep.mubr.f32.mxu0 0.0
    %1124 = vmatmul.mubr.f32.gmra.mxu0 %v1044
    %v1125 = vpop.f32.mrf.mxu0
    %v1126 = vadd.f32 %v1029, %v1125
    %v1127 = vpop.f32.mrf.mxu0
    %1128 = vmatprep.mubr.f32.mxu0 0.0
    %1129 = vmatmul.mubr.f32.gmra.mxu0 %v1047
    %v1130 = vpop.f32.mrf.mxu0
    %v1131 = vadd.f32 %v1034, %v1130
    %v1132 = vpop.f32.mrf.mxu0
    %1133 = vdwg.mxu0
    %v1134 = vld [vmem:[%s510] sm:$0xff]
    %v1135 = vld [vmem:[%s510 + $0x8] sm:$0xff]
    %v1136 = vld [vmem:[%s510 + $0x10] sm:$0xff]
    %v1137 = vld [vmem:[%s510 + $0x18] sm:$0xff]
    %s1138 = scalar_lea.vmem %s4, 256
    %v1139 = vld [vmem:[%s1138] sm:$0xff]
    %v1140 = vld [vmem:[%s1138 + $0x8] sm:$0xff]
    %v1141 = vld [vmem:[%s1138 + $0x10] sm:$0xff]
    %v1142 = vld [vmem:[%s1138 + $0x18] sm:$0xff]
    %v1143 = vld [vmem:[%s1138 + $0x20] sm:$0xff]
    %v1144 = vld [vmem:[%s1138 + $0x28] sm:$0xff]
    %v1145 = vld [vmem:[%s1138 + $0x30] sm:$0xff]
    %v1146 = vld [vmem:[%s1138 + $0x38] sm:$0xff]
    %v1147 = vld [vmem:[%s1138 + $0x40] sm:$0xff]
    %v1148 = vld [vmem:[%s1138 + $0x48] sm:$0xff]
    %v1149 = vld [vmem:[%s1138 + $0x50] sm:$0xff]
    %v1150 = vld [vmem:[%s1138 + $0x58] sm:$0xff]
    %v1151 = vld [vmem:[%s1138 + $0x60] sm:$0xff]
    %v1152 = vld [vmem:[%s1138 + $0x68] sm:$0xff]
    %v1153 = vld [vmem:[%s1138 + $0x70] sm:$0xff]
    %v1154 = vld [vmem:[%s1138 + $0x78] sm:$0xff]
    %1155 = vmatprep.subr.mxu0 0.0
    %1156 = vmatpush1.msra.mxu0 %v1154
    %1157 = vmatprep.subr.mxu0 0.0
    %1158 = vmatpush1.msra.mxu0 %v1153
    %1159 = vmatprep.subr.mxu0 0.0
    %1160 = vmatpush1.msra.mxu0 %v1152
    %1161 = vmatprep.subr.mxu0 0.0
    %1162 = vmatpush1.msra.mxu0 %v1151
    %1163 = vmatprep.subr.mxu0 0.0
    %1164 = vmatpush1.msra.mxu0 %v1150
    %1165 = vmatprep.subr.mxu0 0.0
    %1166 = vmatpush1.msra.mxu0 %v1149
    %1167 = vmatprep.subr.mxu0 0.0
    %1168 = vmatpush1.msra.mxu0 %v1148
    %1169 = vmatprep.subr.mxu0 0.0
    %1170 = vmatpush1.msra.mxu0 %v1147
    %1171 = vmatprep.subr.mxu0 0.0
    %1172 = vmatpush1.msra.mxu0 %v1146
    %1173 = vmatprep.subr.mxu0 0.0
    %1174 = vmatpush1.msra.mxu0 %v1145
    %1175 = vmatprep.subr.mxu0 0.0
    %1176 = vmatpush1.msra.mxu0 %v1144
    %1177 = vmatprep.subr.mxu0 0.0
    %1178 = vmatpush1.msra.mxu0 %v1143
    %1179 = vmatprep.subr.mxu0 0.0
    %1180 = vmatpush1.msra.mxu0 %v1142
    %1181 = vmatprep.subr.mxu0 0.0
    %1182 = vmatpush1.msra.mxu0 %v1141
    %1183 = vmatprep.subr.mxu0 0.0
    %1184 = vmatpush1.msra.mxu0 %v1140
    %1185 = vmatprep.subr.mxu0 0.0
    %1186 = vmatpush1.msra.mxu0 %v1139
    %1187 = vmatprep.subr.mxu0 0.0
    %1188 = vmatpush2.msra.mxu0 0.0
    %1189 = vmatprep.subr.mxu0 0.0
    %1190 = vmatpush2.msra.mxu0 0.0
    %1191 = vmatprep.subr.mxu0 0.0
    %1192 = vmatpush2.msra.mxu0 0.0
    %1193 = vmatprep.subr.mxu0 0.0
    %1194 = vmatpush2.msra.mxu0 0.0
    %1195 = vmatprep.subr.mxu0 0.0
    %1196 = vmatpush2.msra.mxu0 0.0
    %1197 = vmatprep.subr.mxu0 0.0
    %1198 = vmatpush2.msra.mxu0 0.0
    %1199 = vmatprep.subr.mxu0 0.0
    %1200 = vmatpush2.msra.mxu0 0.0
    %1201 = vmatprep.subr.mxu0 0.0
    %1202 = vmatpush2.msra.mxu0 0.0
    %1203 = vmatprep.subr.mxu0 0.0
    %1204 = vmatpush2.msra.mxu0 0.0
    %1205 = vmatprep.subr.mxu0 0.0
    %1206 = vmatpush2.msra.mxu0 0.0
    %1207 = vmatprep.subr.mxu0 0.0
    %1208 = vmatpush2.msra.mxu0 0.0
    %1209 = vmatprep.subr.mxu0 0.0
    %1210 = vmatpush2.msra.mxu0 0.0
    %1211 = vmatprep.subr.mxu0 0.0
    %1212 = vmatpush2.msra.mxu0 0.0
    %1213 = vmatprep.subr.mxu0 0.0
    %1214 = vmatpush2.msra.mxu0 0.0
    %1215 = vmatprep.subr.mxu0 0.0
    %1216 = vmatpush2.msra.mxu0 0.0
    %1217 = vmatprep.subr.mxu0 0.0
    %1218 = vmatpush2.msra.mxu0 0.0
    %1219 = vmatprep.mubr.f32.mxu0 0.0
    %1220 = vmatmul.mubr.f32.gmra.mxu0 %v725
    %v1221 = vpop.f32.mrf.mxu0
    %v1222 = vadd.f32 0.0, %v1221
    %v1223 = vpop.f32.mrf.mxu0
    %1224 = vmatprep.mubr.f32.mxu0 0.0
    %1225 = vmatmul.mubr.f32.gmra.mxu0 %v726
    %v1226 = vpop.f32.mrf.mxu0
    %v1227 = vadd.f32 0.0, %v1226
    %v1228 = vpop.f32.mrf.mxu0
    %1229 = vmatprep.mubr.f32.mxu0 0.0
    %1230 = vmatmul.mubr.f32.gmra.mxu0 %v727
    %v1231 = vpop.f32.mrf.mxu0
    %v1232 = vadd.f32 0.0, %v1231
    %v1233 = vpop.f32.mrf.mxu0
    %1234 = vmatprep.mubr.f32.mxu0 0.0
    %1235 = vmatmul.mubr.f32.gmra.mxu0 %v728
    %v1236 = vpop.f32.mrf.mxu0
    %v1237 = vadd.f32 0.0, %v1236
    %v1238 = vpop.f32.mrf.mxu0
    %1239 = vdwg.mxu0
    %v1241 = vsel %vm315, %v1134, 0
    %v1244 = vsel %vm315, %v1135, 0
    %v1247 = vsel %vm315, %v1136, 0
    %v1250 = vsel %vm315, %v1137, 0
    %1252 = vmatprep.subr.mxu0 0.0
    %1253 = vmatpush1.msra.mxu0 0.0
    %1254 = vmatprep.subr.mxu0 0.0
    %1255 = vmatpush1.msra.mxu0 0.0
    %1256 = vmatprep.subr.mxu0 0.0
    %1257 = vmatpush1.msra.mxu0 0.0
    %1258 = vmatprep.subr.mxu0 0.0
    %1259 = vmatpush1.msra.mxu0 0.0
    %1260 = vmatprep.subr.mxu0 0.0
    %1261 = vmatpush1.msra.mxu0 0.0
    %1262 = vmatprep.subr.mxu0 0.0
    %1263 = vmatpush1.msra.mxu0 0.0
    %1264 = vmatprep.subr.mxu0 0.0
    %1265 = vmatpush1.msra.mxu0 0.0
    %1266 = vmatprep.subr.mxu0 0.0
    %1267 = vmatpush1.msra.mxu0 0.0
    %1268 = vmatprep.subr.mxu0 0.0
    %1269 = vmatpush1.msra.mxu0 0.0
    %1270 = vmatprep.subr.mxu0 0.0
    %1271 = vmatpush1.msra.mxu0 0.0
    %1272 = vmatprep.subr.mxu0 0.0
    %1273 = vmatpush1.msra.mxu0 0.0
    %1274 = vmatprep.subr.mxu0 0.0
    %1275 = vmatpush1.msra.mxu0 0.0
    %1276 = vmatprep.subr.mxu0 0.0
    %1277 = vmatpush1.msra.mxu0 %v1237
    %1278 = vmatprep.subr.mxu0 0.0
    %1279 = vmatpush1.msra.mxu0 %v1232
    %1280 = vmatprep.subr.mxu0 0.0
    %1281 = vmatpush1.msra.mxu0 %v1227
    %1282 = vmatprep.subr.mxu0 0.0
    %1283 = vmatpush1.msra.mxu0 %v1222
    %1284 = vmatprep.subr.mxu0 0.0
    %1285 = vmatpush2.msra.mxu0 0.0
    %1286 = vmatprep.subr.mxu0 0.0
    %1287 = vmatpush2.msra.mxu0 0.0
    %1288 = vmatprep.subr.mxu0 0.0
    %1289 = vmatpush2.msra.mxu0 0.0
    %1290 = vmatprep.subr.mxu0 0.0
    %1291 = vmatpush2.msra.mxu0 0.0
    %1292 = vmatprep.subr.mxu0 0.0
    %1293 = vmatpush2.msra.mxu0 0.0
    %1294 = vmatprep.subr.mxu0 0.0
    %1295 = vmatpush2.msra.mxu0 0.0
    %1296 = vmatprep.subr.mxu0 0.0
    %1297 = vmatpush2.msra.mxu0 0.0
    %1298 = vmatprep.subr.mxu0 0.0
    %1299 = vmatpush2.msra.mxu0 0.0
    %1300 = vmatprep.subr.mxu0 0.0
    %1301 = vmatpush2.msra.mxu0 0.0
    %1302 = vmatprep.subr.mxu0 0.0
    %1303 = vmatpush2.msra.mxu0 0.0
    %1304 = vmatprep.subr.mxu0 0.0
    %1305 = vmatpush2.msra.mxu0 0.0
    %1306 = vmatprep.subr.mxu0 0.0
    %1307 = vmatpush2.msra.mxu0 0.0
    %1308 = vmatprep.subr.mxu0 0.0
    %1309 = vmatpush2.msra.mxu0 0.0
    %1310 = vmatprep.subr.mxu0 0.0
    %1311 = vmatpush2.msra.mxu0 0.0
    %1312 = vmatprep.subr.mxu0 0.0
    %1313 = vmatpush2.msra.mxu0 0.0
    %1314 = vmatprep.subr.mxu0 0.0
    %1315 = vmatpush2.msra.mxu0 0.0
    %1316 = vmatprep.mubr.f32.mxu0 0.0
    %1317 = vmatmul.mubr.f32.gmra.mxu0 %v1241
    %v1318 = vpop.f32.mrf.mxu0
    %v1319 = vadd.f32 0.0, %v1318
    %v1320 = vpop.f32.mrf.mxu0
    %1321 = vmatprep.mubr.f32.mxu0 0.0
    %1322 = vmatmul.mubr.f32.gmra.mxu0 %v1244
    %v1323 = vpop.f32.mrf.mxu0
    %v1324 = vadd.f32 0.0, %v1323
    %v1325 = vpop.f32.mrf.mxu0
    %1326 = vmatprep.mubr.f32.mxu0 0.0
    %1327 = vmatmul.mubr.f32.gmra.mxu0 %v1247
    %v1328 = vpop.f32.mrf.mxu0
    %v1329 = vadd.f32 0.0, %v1328
    %v1330 = vpop.f32.mrf.mxu0
    %1331 = vmatprep.mubr.f32.mxu0 0.0
    %1332 = vmatmul.mubr.f32.gmra.mxu0 %v1250
    %v1333 = vpop.f32.mrf.mxu0
    %v1334 = vadd.f32 0.0, %v1333
    %v1335 = vpop.f32.mrf.mxu0
    %1336 = vdwg.mxu0
    %v1337 = vadd.f32 %v1116, %v1319
    %v1338 = vadd.f32 %v1121, %v1324
    %v1339 = vadd.f32 %v1126, %v1329
    %v1340 = vadd.f32 %v1131, %v1334
    %v1341 = vld [vmem:[#allocation5] sm:$0x1]
    %v1343 = vlaneseq
    %v1344 = vshrl.u32 %v1343, 7
    %v1345 = vsub.s32 0, %v1344
    %v1346 = vrot.slane %v1341, %v1345
    %v1348 = vadd.f32 %v1337, %v1346
    %v1349 = vadd.f32 %v1338, %v1346
    %v1350 = vadd.f32 %v1339, %v1346
    %v1351 = vadd.f32 %v1340, %v1346
    %1352 = vst [vmem:[%s12] sm:$0xff] %v1348
    %1353 = vst [vmem:[%s12 + $0x8] sm:$0xff] %v1349
    %1354 = vst [vmem:[%s12 + $0x10] sm:$0xff] %v1350
    %1355 = vst [vmem:[%s12 + $0x18] sm:$0xff] %v1351
    %v1356 = vmax.f32 %v1348, 0.0
    %v1357 = vmax.f32 %v1349, 0.0
    %v1358 = vmax.f32 %v1350, 0.0
    %v1359 = vmax.f32 %v1351, 0.0
    %v1360 = vld [vmem:[%s6] sm:$0xff]
    %v1361 = vld [vmem:[%s6 + $0x8] sm:$0xff]
    %v1362 = vld [vmem:[%s6 + $0x10] sm:$0xff]
    %v1363 = vld [vmem:[%s6 + $0x18] sm:$0xff]
    %v1364 = vld [vmem:[%s6 + $0x20] sm:$0xff]
    %v1365 = vld [vmem:[%s6 + $0x28] sm:$0xff]
    %v1366 = vld [vmem:[%s6 + $0x30] sm:$0xff]
    %v1367 = vld [vmem:[%s6 + $0x38] sm:$0xff]
    %v1368 = vld [vmem:[%s6 + $0x40] sm:$0xff]
    %v1369 = vld [vmem:[%s6 + $0x48] sm:$0xff]
    %v1370 = vld [vmem:[%s6 + $0x50] sm:$0xff]
    %v1371 = vld [vmem:[%s6 + $0x58] sm:$0xff]
    %v1372 = vld [vmem:[%s6 + $0x60] sm:$0xff]
    %v1373 = vld [vmem:[%s6 + $0x68] sm:$0xff]
    %v1374 = vld [vmem:[%s6 + $0x70] sm:$0xff]
    %v1375 = vld [vmem:[%s6 + $0x78] sm:$0xff]
    %v1376 = vld [vmem:[%s6 + $0x80] sm:$0xff]
    %v1377 = vld [vmem:[%s6 + $0x88] sm:$0xff]
    %v1378 = vld [vmem:[%s6 + $0x90] sm:$0xff]
    %v1379 = vld [vmem:[%s6 + $0x98] sm:$0xff]
    %v1380 = vld [vmem:[%s6 + $0xa0] sm:$0xff]
    %v1381 = vld [vmem:[%s6 + $0xa8] sm:$0xff]
    %v1382 = vld [vmem:[%s6 + $0xb0] sm:$0xff]
    %v1383 = vld [vmem:[%s6 + $0xb8] sm:$0xff]
    %v1384 = vld [vmem:[%s6 + $0xc0] sm:$0xff]
    %v1385 = vld [vmem:[%s6 + $0xc8] sm:$0xff]
    %v1386 = vld [vmem:[%s6 + $0xd0] sm:$0xff]
    %v1387 = vld [vmem:[%s6 + $0xd8] sm:$0xff]
    %v1388 = vld [vmem:[%s6 + $0xe0] sm:$0xff]
    %v1389 = vld [vmem:[%s6 + $0xe8] sm:$0xff]
    %v1390 = vld [vmem:[%s6 + $0xf0] sm:$0xff]
    %v1391 = vld [vmem:[%s6 + $0xf8] sm:$0xff]
    %v1392 = vld [vmem:[%s6 + $0x100] sm:$0xff]
    %v1393 = vld [vmem:[%s6 + $0x108] sm:$0xff]
    %v1394 = vld [vmem:[%s6 + $0x110] sm:$0xff]
    %v1395 = vld [vmem:[%s6 + $0x118] sm:$0xff]
    %v1396 = vld [vmem:[%s6 + $0x120] sm:$0xff]
    %v1397 = vld [vmem:[%s6 + $0x128] sm:$0xff]
    %v1398 = vld [vmem:[%s6 + $0x130] sm:$0xff]
    %v1399 = vld [vmem:[%s6 + $0x138] sm:$0xff]
    %v1400 = vld [vmem:[%s6 + $0x140] sm:$0xff]
    %v1401 = vld [vmem:[%s6 + $0x148] sm:$0xff]
    %v1402 = vld [vmem:[%s6 + $0x150] sm:$0xff]
    %v1403 = vld [vmem:[%s6 + $0x158] sm:$0xff]
    %v1404 = vld [vmem:[%s6 + $0x160] sm:$0xff]
    %v1405 = vld [vmem:[%s6 + $0x168] sm:$0xff]
    %v1406 = vld [vmem:[%s6 + $0x170] sm:$0xff]
    %v1407 = vld [vmem:[%s6 + $0x178] sm:$0xff]
    %v1408 = vld [vmem:[%s6 + $0x180] sm:$0xff]
    %v1409 = vld [vmem:[%s6 + $0x188] sm:$0xff]
    %v1410 = vld [vmem:[%s6 + $0x190] sm:$0xff]
    %v1411 = vld [vmem:[%s6 + $0x198] sm:$0xff]
    %v1412 = vld [vmem:[%s6 + $0x1a0] sm:$0xff]
    %v1413 = vld [vmem:[%s6 + $0x1a8] sm:$0xff]
    %v1414 = vld [vmem:[%s6 + $0x1b0] sm:$0xff]
    %v1415 = vld [vmem:[%s6 + $0x1b8] sm:$0xff]
    %v1416 = vld [vmem:[%s6 + $0x1c0] sm:$0xff]
    %v1417 = vld [vmem:[%s6 + $0x1c8] sm:$0xff]
    %v1418 = vld [vmem:[%s6 + $0x1d0] sm:$0xff]
    %v1419 = vld [vmem:[%s6 + $0x1d8] sm:$0xff]
    %v1420 = vld [vmem:[%s6 + $0x1e0] sm:$0xff]
    %v1421 = vld [vmem:[%s6 + $0x1e8] sm:$0xff]
    %v1422 = vld [vmem:[%s6 + $0x1f0] sm:$0xff]
    %v1423 = vld [vmem:[%s6 + $0x1f8] sm:$0xff]
    %1424 = vmatprep.subr.mxu0 %v1421
    %1425 = vmatpush1.msra.mxu0 %v1420
    %1426 = vmatprep.subr.mxu0 %v1417
    %1427 = vmatpush1.msra.mxu0 %v1416
    %1428 = vmatprep.subr.mxu0 %v1413
    %1429 = vmatpush1.msra.mxu0 %v1412
    %1430 = vmatprep.subr.mxu0 %v1409
    %1431 = vmatpush1.msra.mxu0 %v1408
    %1432 = vmatprep.subr.mxu0 %v1405
    %1433 = vmatpush1.msra.mxu0 %v1404
    %1434 = vmatprep.subr.mxu0 %v1401
    %1435 = vmatpush1.msra.mxu0 %v1400
    %1436 = vmatprep.subr.mxu0 %v1397
    %1437 = vmatpush1.msra.mxu0 %v1396
    %1438 = vmatprep.subr.mxu0 %v1393
    %1439 = vmatpush1.msra.mxu0 %v1392
    %1440 = vmatprep.subr.mxu0 %v1389
    %1441 = vmatpush1.msra.mxu0 %v1388
    %1442 = vmatprep.subr.mxu0 %v1385
    %1443 = vmatpush1.msra.mxu0 %v1384
    %1444 = vmatprep.subr.mxu0 %v1381
    %1445 = vmatpush1.msra.mxu0 %v1380
    %1446 = vmatprep.subr.mxu0 %v1377
    %1447 = vmatpush1.msra.mxu0 %v1376
    %1448 = vmatprep.subr.mxu0 %v1373
    %1449 = vmatpush1.msra.mxu0 %v1372
    %1450 = vmatprep.subr.mxu0 %v1369
    %1451 = vmatpush1.msra.mxu0 %v1368
    %1452 = vmatprep.subr.mxu0 %v1365
    %1453 = vmatpush1.msra.mxu0 %v1364
    %1454 = vmatprep.subr.mxu0 %v1361
    %1455 = vmatpush1.msra.mxu0 %v1360
    %1456 = vmatprep.subr.mxu0 0.0
    %1457 = vmatpush2.msra.mxu0 0.0
    %1458 = vmatprep.subr.mxu0 0.0
    %1459 = vmatpush2.msra.mxu0 0.0
    %1460 = vmatprep.subr.mxu0 0.0
    %1461 = vmatpush2.msra.mxu0 0.0
    %1462 = vmatprep.subr.mxu0 0.0
    %1463 = vmatpush2.msra.mxu0 0.0
    %1464 = vmatprep.subr.mxu0 0.0
    %1465 = vmatpush2.msra.mxu0 0.0
    %1466 = vmatprep.subr.mxu0 0.0
    %1467 = vmatpush2.msra.mxu0 0.0
    %1468 = vmatprep.subr.mxu0 0.0
    %1469 = vmatpush2.msra.mxu0 0.0
    %1470 = vmatprep.subr.mxu0 0.0
    %1471 = vmatpush2.msra.mxu0 0.0
    %1472 = vmatprep.subr.mxu0 0.0
    %1473 = vmatpush2.msra.mxu0 0.0
    %1474 = vmatprep.subr.mxu0 0.0
    %1475 = vmatpush2.msra.mxu0 0.0
    %1476 = vmatprep.subr.mxu0 0.0
    %1477 = vmatpush2.msra.mxu0 0.0
    %1478 = vmatprep.subr.mxu0 0.0
    %1479 = vmatpush2.msra.mxu0 0.0
    %1480 = vmatprep.subr.mxu0 0.0
    %1481 = vmatpush2.msra.mxu0 0.0
    %1482 = vmatprep.subr.mxu0 0.0
    %1483 = vmatpush2.msra.mxu0 0.0
    %1484 = vmatprep.subr.mxu0 0.0
    %1485 = vmatpush2.msra.mxu0 0.0
    %1486 = vmatprep.subr.mxu0 0.0
    %1487 = vmatpush2.msra.mxu0 0.0
    %1488 = vmatprep.mubr.f32.mxu0 0.0
    %1489 = vmatmul.mubr.f32.gmra.mxu0 %v1356
    %v1490 = vpop.f32.mrf.mxu0
    %v1491 = vadd.f32 0.0, %v1490
    %v1492 = vpop.f32.mrf.mxu0
    %v1493 = vadd.f32 0.0, %v1492
    %1494 = vmatprep.mubr.f32.mxu0 0.0
    %1495 = vmatmul.mubr.f32.gmra.mxu0 %v1357
    %v1496 = vpop.f32.mrf.mxu0
    %v1497 = vadd.f32 0.0, %v1496
    %v1498 = vpop.f32.mrf.mxu0
    %v1499 = vadd.f32 0.0, %v1498
    %1500 = vmatprep.mubr.f32.mxu0 0.0
    %1501 = vmatmul.mubr.f32.gmra.mxu0 %v1358
    %v1502 = vpop.f32.mrf.mxu0
    %v1503 = vadd.f32 0.0, %v1502
    %v1504 = vpop.f32.mrf.mxu0
    %v1505 = vadd.f32 0.0, %v1504
    %1506 = vmatprep.mubr.f32.mxu0 0.0
    %1507 = vmatmul.mubr.f32.gmra.mxu0 %v1359
    %v1508 = vpop.f32.mrf.mxu0
    %v1509 = vadd.f32 0.0, %v1508
    %v1510 = vpop.f32.mrf.mxu0
    %v1511 = vadd.f32 0.0, %v1510
    %1512 = vdwg.mxu0
    %1513 = vmatprep.subr.mxu0 %v1423
    %1514 = vmatpush1.msra.mxu0 %v1422
    %1515 = vmatprep.subr.mxu0 %v1419
    %1516 = vmatpush1.msra.mxu0 %v1418
    %1517 = vmatprep.subr.mxu0 %v1415
    %1518 = vmatpush1.msra.mxu0 %v1414
    %1519 = vmatprep.subr.mxu0 %v1411
    %1520 = vmatpush1.msra.mxu0 %v1410
    %1521 = vmatprep.subr.mxu0 %v1407
    %1522 = vmatpush1.msra.mxu0 %v1406
    %1523 = vmatprep.subr.mxu0 %v1403
    %1524 = vmatpush1.msra.mxu0 %v1402
    %1525 = vmatprep.subr.mxu0 %v1399
    %1526 = vmatpush1.msra.mxu0 %v1398
    %1527 = vmatprep.subr.mxu0 %v1395
    %1528 = vmatpush1.msra.mxu0 %v1394
    %1529 = vmatprep.subr.mxu0 %v1391
    %1530 = vmatpush1.msra.mxu0 %v1390
    %1531 = vmatprep.subr.mxu0 %v1387
    %1532 = vmatpush1.msra.mxu0 %v1386
    %1533 = vmatprep.subr.mxu0 %v1383
    %1534 = vmatpush1.msra.mxu0 %v1382
    %1535 = vmatprep.subr.mxu0 %v1379
    %1536 = vmatpush1.msra.mxu0 %v1378
    %1537 = vmatprep.subr.mxu0 %v1375
    %1538 = vmatpush1.msra.mxu0 %v1374
    %1539 = vmatprep.subr.mxu0 %v1371
    %1540 = vmatpush1.msra.mxu0 %v1370
    %1541 = vmatprep.subr.mxu0 %v1367
    %1542 = vmatpush1.msra.mxu0 %v1366
    %1543 = vmatprep.subr.mxu0 %v1363
    %1544 = vmatpush1.msra.mxu0 %v1362
    %1545 = vmatprep.subr.mxu0 0.0
    %1546 = vmatpush2.msra.mxu0 0.0
    %1547 = vmatprep.subr.mxu0 0.0
    %1548 = vmatpush2.msra.mxu0 0.0
    %1549 = vmatprep.subr.mxu0 0.0
    %1550 = vmatpush2.msra.mxu0 0.0
    %1551 = vmatprep.subr.mxu0 0.0
    %1552 = vmatpush2.msra.mxu0 0.0
    %1553 = vmatprep.subr.mxu0 0.0
    %1554 = vmatpush2.msra.mxu0 0.0
    %1555 = vmatprep.subr.mxu0 0.0
    %1556 = vmatpush2.msra.mxu0 0.0
    %1557 = vmatprep.subr.mxu0 0.0
    %1558 = vmatpush2.msra.mxu0 0.0
    %1559 = vmatprep.subr.mxu0 0.0
    %1560 = vmatpush2.msra.mxu0 0.0
    %1561 = vmatprep.subr.mxu0 0.0
    %1562 = vmatpush2.msra.mxu0 0.0
    %1563 = vmatprep.subr.mxu0 0.0
    %1564 = vmatpush2.msra.mxu0 0.0
    %1565 = vmatprep.subr.mxu0 0.0
    %1566 = vmatpush2.msra.mxu0 0.0
    %1567 = vmatprep.subr.mxu0 0.0
    %1568 = vmatpush2.msra.mxu0 0.0
    %1569 = vmatprep.subr.mxu0 0.0
    %1570 = vmatpush2.msra.mxu0 0.0
    %1571 = vmatprep.subr.mxu0 0.0
    %1572 = vmatpush2.msra.mxu0 0.0
    %1573 = vmatprep.subr.mxu0 0.0
    %1574 = vmatpush2.msra.mxu0 0.0
    %1575 = vmatprep.subr.mxu0 0.0
    %1576 = vmatpush2.msra.mxu0 0.0
    %1577 = vmatprep.mubr.f32.mxu0 0.0
    %1578 = vmatmul.mubr.f32.gmra.mxu0 %v1356
    %v1579 = vpop.f32.mrf.mxu0
    %v1580 = vadd.f32 0.0, %v1579
    %v1581 = vpop.f32.mrf.mxu0
    %v1582 = vadd.f32 0.0, %v1581
    %1583 = vmatprep.mubr.f32.mxu0 0.0
    %1584 = vmatmul.mubr.f32.gmra.mxu0 %v1357
    %v1585 = vpop.f32.mrf.mxu0
    %v1586 = vadd.f32 0.0, %v1585
    %v1587 = vpop.f32.mrf.mxu0
    %v1588 = vadd.f32 0.0, %v1587
    %1589 = vmatprep.mubr.f32.mxu0 0.0
    %1590 = vmatmul.mubr.f32.gmra.mxu0 %v1358
    %v1591 = vpop.f32.mrf.mxu0
    %v1592 = vadd.f32 0.0, %v1591
    %v1593 = vpop.f32.mrf.mxu0
    %v1594 = vadd.f32 0.0, %v1593
    %1595 = vmatprep.mubr.f32.mxu0 0.0
    %1596 = vmatmul.mubr.f32.gmra.mxu0 %v1359
    %v1597 = vpop.f32.mrf.mxu0
    %v1598 = vadd.f32 0.0, %v1597
    %v1599 = vpop.f32.mrf.mxu0
    %v1600 = vadd.f32 0.0, %v1599
    %1601 = vdwg.mxu0
    %v1602 = vld [vmem:[#allocation7] sm:$0xff]
    %v1603 = vld [vmem:[#allocation7 + $0x8] sm:$0xff]
    %v1604 = vld [vmem:[#allocation7 + $0x10] sm:$0xff]
    %v1605 = vld [vmem:[#allocation7 + $0x18] sm:$0xff]
    %v1606 = vld [vmem:[#allocation7 + $0x20] sm:$0xff]
    %v1607 = vld [vmem:[#allocation7 + $0x28] sm:$0xff]
    %v1608 = vld [vmem:[#allocation7 + $0x30] sm:$0xff]
    %v1609 = vld [vmem:[#allocation7 + $0x38] sm:$0xff]
    %v1610 = vld [vmem:[#allocation7 + $0x40] sm:$0xff]
    %v1611 = vld [vmem:[#allocation7 + $0x48] sm:$0xff]
    %v1612 = vld [vmem:[#allocation7 + $0x50] sm:$0xff]
    %v1613 = vld [vmem:[#allocation7 + $0x58] sm:$0xff]
    %v1614 = vld [vmem:[#allocation7 + $0x60] sm:$0xff]
    %v1615 = vld [vmem:[#allocation7 + $0x68] sm:$0xff]
    %v1616 = vld [vmem:[#allocation7 + $0x70] sm:$0xff]
    %v1617 = vld [vmem:[#allocation7 + $0x78] sm:$0xff]
    %v1618 = vmul.f32 %v1491, %v1602
    %v1619 = vmul.f32 %v1493, %v1603
    %v1620 = vmul.f32 %v1580, %v1604
    %v1621 = vmul.f32 %v1582, %v1605
    %v1622 = vmul.f32 %v1497, %v1606
    %v1623 = vmul.f32 %v1499, %v1607
    %v1624 = vmul.f32 %v1586, %v1608
    %v1625 = vmul.f32 %v1588, %v1609
    %v1626 = vmul.f32 %v1503, %v1610
    %v1627 = vmul.f32 %v1505, %v1611
    %v1628 = vmul.f32 %v1592, %v1612
    %v1629 = vmul.f32 %v1594, %v1613
    %v1630 = vmul.f32 %v1509, %v1614
    %v1631 = vmul.f32 %v1511, %v1615
    %v1632 = vmul.f32 %v1598, %v1616
    %v1633 = vmul.f32 %v1600, %v1617
    %v1634 = vld [vmem:[%s8] sm:$0xff]
    %v1635 = vld [vmem:[%s8 + $0x8] sm:$0xff]
    %v1636 = vld [vmem:[%s8 + $0x10] sm:$0xff]
    %v1637 = vld [vmem:[%s8 + $0x18] sm:$0xff]
    %v1638 = vld [vmem:[%s8 + $0x20] sm:$0xff]
    %v1639 = vld [vmem:[%s8 + $0x28] sm:$0xff]
    %v1640 = vld [vmem:[%s8 + $0x30] sm:$0xff]
    %v1641 = vld [vmem:[%s8 + $0x38] sm:$0xff]
    %v1642 = vld [vmem:[%s8 + $0x40] sm:$0xff]
    %v1643 = vld [vmem:[%s8 + $0x48] sm:$0xff]
    %v1644 = vld [vmem:[%s8 + $0x50] sm:$0xff]
    %v1645 = vld [vmem:[%s8 + $0x58] sm:$0xff]
    %v1646 = vld [vmem:[%s8 + $0x60] sm:$0xff]
    %v1647 = vld [vmem:[%s8 + $0x68] sm:$0xff]
    %v1648 = vld [vmem:[%s8 + $0x70] sm:$0xff]
    %v1649 = vld [vmem:[%s8 + $0x78] sm:$0xff]
    %v1650 = vld [vmem:[%s8 + $0x80] sm:$0xff]
    %v1651 = vld [vmem:[%s8 + $0x88] sm:$0xff]
    %v1652 = vld [vmem:[%s8 + $0x90] sm:$0xff]
    %v1653 = vld [vmem:[%s8 + $0x98] sm:$0xff]
    %v1654 = vld [vmem:[%s8 + $0xa0] sm:$0xff]
    %v1655 = vld [vmem:[%s8 + $0xa8] sm:$0xff]
    %v1656 = vld [vmem:[%s8 + $0xb0] sm:$0xff]
    %v1657 = vld [vmem:[%s8 + $0xb8] sm:$0xff]
    %v1658 = vld [vmem:[%s8 + $0xc0] sm:$0xff]
    %v1659 = vld [vmem:[%s8 + $0xc8] sm:$0xff]
    %v1660 = vld [vmem:[%s8 + $0xd0] sm:$0xff]
    %v1661 = vld [vmem:[%s8 + $0xd8] sm:$0xff]
    %v1662 = vld [vmem:[%s8 + $0xe0] sm:$0xff]
    %v1663 = vld [vmem:[%s8 + $0xe8] sm:$0xff]
    %v1664 = vld [vmem:[%s8 + $0xf0] sm:$0xff]
    %v1665 = vld [vmem:[%s8 + $0xf8] sm:$0xff]
    %v1666 = vld [vmem:[%s8 + $0x100] sm:$0xff]
    %v1667 = vld [vmem:[%s8 + $0x108] sm:$0xff]
    %v1668 = vld [vmem:[%s8 + $0x110] sm:$0xff]
    %v1669 = vld [vmem:[%s8 + $0x118] sm:$0xff]
    %v1670 = vld [vmem:[%s8 + $0x120] sm:$0xff]
    %v1671 = vld [vmem:[%s8 + $0x128] sm:$0xff]
    %v1672 = vld [vmem:[%s8 + $0x130] sm:$0xff]
    %v1673 = vld [vmem:[%s8 + $0x138] sm:$0xff]
    %v1674 = vld [vmem:[%s8 + $0x140] sm:$0xff]
    %v1675 = vld [vmem:[%s8 + $0x148] sm:$0xff]
    %v1676 = vld [vmem:[%s8 + $0x150] sm:$0xff]
    %v1677 = vld [vmem:[%s8 + $0x158] sm:$0xff]
    %v1678 = vld [vmem:[%s8 + $0x160] sm:$0xff]
    %v1679 = vld [vmem:[%s8 + $0x168] sm:$0xff]
    %v1680 = vld [vmem:[%s8 + $0x170] sm:$0xff]
    %v1681 = vld [vmem:[%s8 + $0x178] sm:$0xff]
    %v1682 = vld [vmem:[%s8 + $0x180] sm:$0xff]
    %v1683 = vld [vmem:[%s8 + $0x188] sm:$0xff]
    %v1684 = vld [vmem:[%s8 + $0x190] sm:$0xff]
    %v1685 = vld [vmem:[%s8 + $0x198] sm:$0xff]
    %v1686 = vld [vmem:[%s8 + $0x1a0] sm:$0xff]
    %v1687 = vld [vmem:[%s8 + $0x1a8] sm:$0xff]
    %v1688 = vld [vmem:[%s8 + $0x1b0] sm:$0xff]
    %v1689 = vld [vmem:[%s8 + $0x1b8] sm:$0xff]
    %v1690 = vld [vmem:[%s8 + $0x1c0] sm:$0xff]
    %v1691 = vld [vmem:[%s8 + $0x1c8] sm:$0xff]
    %v1692 = vld [vmem:[%s8 + $0x1d0] sm:$0xff]
    %v1693 = vld [vmem:[%s8 + $0x1d8] sm:$0xff]
    %v1694 = vld [vmem:[%s8 + $0x1e0] sm:$0xff]
    %v1695 = vld [vmem:[%s8 + $0x1e8] sm:$0xff]
    %v1696 = vld [vmem:[%s8 + $0x1f0] sm:$0xff]
    %v1697 = vld [vmem:[%s8 + $0x1f8] sm:$0xff]
    %1698 = vmatprep.subr.mxu0 0.0
    %1699 = vmatpush1.msra.mxu0 %v1649
    %1700 = vmatprep.subr.mxu0 0.0
    %1701 = vmatpush1.msra.mxu0 %v1648
    %1702 = vmatprep.subr.mxu0 0.0
    %1703 = vmatpush1.msra.mxu0 %v1647
    %1704 = vmatprep.subr.mxu0 0.0
    %1705 = vmatpush1.msra.mxu0 %v1646
    %1706 = vmatprep.subr.mxu0 0.0
    %1707 = vmatpush1.msra.mxu0 %v1645
    %1708 = vmatprep.subr.mxu0 0.0
    %1709 = vmatpush1.msra.mxu0 %v1644
    %1710 = vmatprep.subr.mxu0 0.0
    %1711 = vmatpush1.msra.mxu0 %v1643
    %1712 = vmatprep.subr.mxu0 0.0
    %1713 = vmatpush1.msra.mxu0 %v1642
    %1714 = vmatprep.subr.mxu0 0.0
    %1715 = vmatpush1.msra.mxu0 %v1641
    %1716 = vmatprep.subr.mxu0 0.0
    %1717 = vmatpush1.msra.mxu0 %v1640
    %1718 = vmatprep.subr.mxu0 0.0
    %1719 = vmatpush1.msra.mxu0 %v1639
    %1720 = vmatprep.subr.mxu0 0.0
    %1721 = vmatpush1.msra.mxu0 %v1638
    %1722 = vmatprep.subr.mxu0 0.0
    %1723 = vmatpush1.msra.mxu0 %v1637
    %1724 = vmatprep.subr.mxu0 0.0
    %1725 = vmatpush1.msra.mxu0 %v1636
    %1726 = vmatprep.subr.mxu0 0.0
    %1727 = vmatpush1.msra.mxu0 %v1635
    %1728 = vmatprep.subr.mxu0 0.0
    %1729 = vmatpush1.msra.mxu0 %v1634
    %1730 = vmatprep.subr.mxu0 0.0
    %1731 = vmatpush2.msra.mxu0 %v1665
    %1732 = vmatprep.subr.mxu0 0.0
    %1733 = vmatpush2.msra.mxu0 %v1664
    %1734 = vmatprep.subr.mxu0 0.0
    %1735 = vmatpush2.msra.mxu0 %v1663
    %1736 = vmatprep.subr.mxu0 0.0
    %1737 = vmatpush2.msra.mxu0 %v1662
    %1738 = vmatprep.subr.mxu0 0.0
    %1739 = vmatpush2.msra.mxu0 %v1661
    %1740 = vmatprep.subr.mxu0 0.0
    %1741 = vmatpush2.msra.mxu0 %v1660
    %1742 = vmatprep.subr.mxu0 0.0
    %1743 = vmatpush2.msra.mxu0 %v1659
    %1744 = vmatprep.subr.mxu0 0.0
    %1745 = vmatpush2.msra.mxu0 %v1658
    %1746 = vmatprep.subr.mxu0 0.0
    %1747 = vmatpush2.msra.mxu0 %v1657
    %1748 = vmatprep.subr.mxu0 0.0
    %1749 = vmatpush2.msra.mxu0 %v1656
    %1750 = vmatprep.subr.mxu0 0.0
    %1751 = vmatpush2.msra.mxu0 %v1655
    %1752 = vmatprep.subr.mxu0 0.0
    %1753 = vmatpush2.msra.mxu0 %v1654
    %1754 = vmatprep.subr.mxu0 0.0
    %1755 = vmatpush2.msra.mxu0 %v1653
    %1756 = vmatprep.subr.mxu0 0.0
    %1757 = vmatpush2.msra.mxu0 %v1652
    %1758 = vmatprep.subr.mxu0 0.0
    %1759 = vmatpush2.msra.mxu0 %v1651
    %1760 = vmatprep.subr.mxu0 0.0
    %1761 = vmatpush2.msra.mxu0 %v1650
    %1762 = vmatprep.mubr.f32.mxu0 %v1619
    %1763 = vmatmul.mubr.f32.gmra.mxu0 %v1618
    %v1764 = vpop.f32.mrf.mxu0
    %v1765 = vadd.f32 0.0, %v1764
    %v1766 = vpop.f32.mrf.mxu0
    %1767 = vmatprep.mubr.f32.mxu0 %v1623
    %1768 = vmatmul.mubr.f32.gmra.mxu0 %v1622
    %v1769 = vpop.f32.mrf.mxu0
    %v1770 = vadd.f32 0.0, %v1769
    %v1771 = vpop.f32.mrf.mxu0
    %1772 = vmatprep.mubr.f32.mxu0 %v1627
    %1773 = vmatmul.mubr.f32.gmra.mxu0 %v1626
    %v1774 = vpop.f32.mrf.mxu0
    %v1775 = vadd.f32 0.0, %v1774
    %v1776 = vpop.f32.mrf.mxu0
    %1777 = vmatprep.mubr.f32.mxu0 %v1631
    %1778 = vmatmul.mubr.f32.gmra.mxu0 %v1630
    %v1779 = vpop.f32.mrf.mxu0
    %v1780 = vadd.f32 0.0, %v1779
    %v1781 = vpop.f32.mrf.mxu0
    %1782 = vdwg.mxu0
    %1783 = vmatprep.subr.mxu0 0.0
    %1784 = vmatpush1.msra.mxu0 %v1681
    %1785 = vmatprep.subr.mxu0 0.0
    %1786 = vmatpush1.msra.mxu0 %v1680
    %1787 = vmatprep.subr.mxu0 0.0
    %1788 = vmatpush1.msra.mxu0 %v1679
    %1789 = vmatprep.subr.mxu0 0.0
    %1790 = vmatpush1.msra.mxu0 %v1678
    %1791 = vmatprep.subr.mxu0 0.0
    %1792 = vmatpush1.msra.mxu0 %v1677
    %1793 = vmatprep.subr.mxu0 0.0
    %1794 = vmatpush1.msra.mxu0 %v1676
    %1795 = vmatprep.subr.mxu0 0.0
    %1796 = vmatpush1.msra.mxu0 %v1675
    %1797 = vmatprep.subr.mxu0 0.0
    %1798 = vmatpush1.msra.mxu0 %v1674
    %1799 = vmatprep.subr.mxu0 0.0
    %1800 = vmatpush1.msra.mxu0 %v1673
    %1801 = vmatprep.subr.mxu0 0.0
    %1802 = vmatpush1.msra.mxu0 %v1672
    %1803 = vmatprep.subr.mxu0 0.0
    %1804 = vmatpush1.msra.mxu0 %v1671
    %1805 = vmatprep.subr.mxu0 0.0
    %1806 = vmatpush1.msra.mxu0 %v1670
    %1807 = vmatprep.subr.mxu0 0.0
    %1808 = vmatpush1.msra.mxu0 %v1669
    %1809 = vmatprep.subr.mxu0 0.0
    %1810 = vmatpush1.msra.mxu0 %v1668
    %1811 = vmatprep.subr.mxu0 0.0
    %1812 = vmatpush1.msra.mxu0 %v1667
    %1813 = vmatprep.subr.mxu0 0.0
    %1814 = vmatpush1.msra.mxu0 %v1666
    %1815 = vmatprep.subr.mxu0 0.0
    %1816 = vmatpush2.msra.mxu0 %v1697
    %1817 = vmatprep.subr.mxu0 0.0
    %1818 = vmatpush2.msra.mxu0 %v1696
    %1819 = vmatprep.subr.mxu0 0.0
    %1820 = vmatpush2.msra.mxu0 %v1695
    %1821 = vmatprep.subr.mxu0 0.0
    %1822 = vmatpush2.msra.mxu0 %v1694
    %1823 = vmatprep.subr.mxu0 0.0
    %1824 = vmatpush2.msra.mxu0 %v1693
    %1825 = vmatprep.subr.mxu0 0.0
    %1826 = vmatpush2.msra.mxu0 %v1692
    %1827 = vmatprep.subr.mxu0 0.0
    %1828 = vmatpush2.msra.mxu0 %v1691
    %1829 = vmatprep.subr.mxu0 0.0
    %1830 = vmatpush2.msra.mxu0 %v1690
    %1831 = vmatprep.subr.mxu0 0.0
    %1832 = vmatpush2.msra.mxu0 %v1689
    %1833 = vmatprep.subr.mxu0 0.0
    %1834 = vmatpush2.msra.mxu0 %v1688
    %1835 = vmatprep.subr.mxu0 0.0
    %1836 = vmatpush2.msra.mxu0 %v1687
    %1837 = vmatprep.subr.mxu0 0.0
    %1838 = vmatpush2.msra.mxu0 %v1686
    %1839 = vmatprep.subr.mxu0 0.0
    %1840 = vmatpush2.msra.mxu0 %v1685
    %1841 = vmatprep.subr.mxu0 0.0
    %1842 = vmatpush2.msra.mxu0 %v1684
    %1843 = vmatprep.subr.mxu0 0.0
    %1844 = vmatpush2.msra.mxu0 %v1683
    %1845 = vmatprep.subr.mxu0 0.0
    %1846 = vmatpush2.msra.mxu0 %v1682
    %1847 = vmatprep.mubr.f32.mxu0 %v1621
    %1848 = vmatmul.mubr.f32.gmra.mxu0 %v1620
    %v1849 = vpop.f32.mrf.mxu0
    %v1850 = vadd.f32 %v1765, %v1849
    %v1851 = vpop.f32.mrf.mxu0
    %1852 = vmatprep.mubr.f32.mxu0 %v1625
    %1853 = vmatmul.mubr.f32.gmra.mxu0 %v1624
    %v1854 = vpop.f32.mrf.mxu0
    %v1855 = vadd.f32 %v1770, %v1854
    %v1856 = vpop.f32.mrf.mxu0
    %1857 = vmatprep.mubr.f32.mxu0 %v1629
    %1858 = vmatmul.mubr.f32.gmra.mxu0 %v1628
    %v1859 = vpop.f32.mrf.mxu0
    %v1860 = vadd.f32 %v1775, %v1859
    %v1861 = vpop.f32.mrf.mxu0
    %1862 = vmatprep.mubr.f32.mxu0 %v1633
    %1863 = vmatmul.mubr.f32.gmra.mxu0 %v1632
    %v1864 = vpop.f32.mrf.mxu0
    %v1865 = vadd.f32 %v1780, %v1864
    %v1866 = vpop.f32.mrf.mxu0
    %1867 = vdwg.mxu0
    %v1868 = vld [vmem:[#allocation8] sm:$0x3]
    %v1869 = vld [vmem:[#allocation10] sm:$0x1]
    %v1871 = vlaneseq
    %v1872 = vshrl.u32 %v1871, 7
    %v1873 = vsub.s32 0, %v1872
    %v1874 = vrot.slane %v1869, %v1873
    %v1877 = vsel %vm315, %v1868, 0
    %1879 = vmatprep.subr.mxu0 0.0
    %1880 = vmatpush1.msra.mxu0 0.0
    %1881 = vmatprep.subr.mxu0 0.0
    %1882 = vmatpush1.msra.mxu0 0.0
    %1883 = vmatprep.subr.mxu0 0.0
    %1884 = vmatpush1.msra.mxu0 0.0
    %1885 = vmatprep.subr.mxu0 0.0
    %1886 = vmatpush1.msra.mxu0 0.0
    %1887 = vmatprep.subr.mxu0 0.0
    %1888 = vmatpush1.msra.mxu0 0.0
    %1889 = vmatprep.subr.mxu0 0.0
    %1890 = vmatpush1.msra.mxu0 0.0
    %1891 = vmatprep.subr.mxu0 0.0
    %1892 = vmatpush1.msra.mxu0 0.0
    %1893 = vmatprep.subr.mxu0 0.0
    %1894 = vmatpush1.msra.mxu0 0.0
    %1895 = vmatprep.subr.mxu0 0.0
    %1896 = vmatpush1.msra.mxu0 0.0
    %1897 = vmatprep.subr.mxu0 0.0
    %1898 = vmatpush1.msra.mxu0 0.0
    %1899 = vmatprep.subr.mxu0 0.0
    %1900 = vmatpush1.msra.mxu0 0.0
    %1901 = vmatprep.subr.mxu0 0.0
    %1902 = vmatpush1.msra.mxu0 0.0
    %1903 = vmatprep.subr.mxu0 0.0
    %1904 = vmatpush1.msra.mxu0 %v1865
    %1905 = vmatprep.subr.mxu0 0.0
    %1906 = vmatpush1.msra.mxu0 %v1860
    %1907 = vmatprep.subr.mxu0 0.0
    %1908 = vmatpush1.msra.mxu0 %v1855
    %1909 = vmatprep.subr.mxu0 0.0
    %1910 = vmatpush1.msra.mxu0 %v1850
    %1911 = vmatprep.subr.mxu0 0.0
    %1912 = vmatpush2.msra.mxu0 0.0
    %1913 = vmatprep.subr.mxu0 0.0
    %1914 = vmatpush2.msra.mxu0 0.0
    %1915 = vmatprep.subr.mxu0 0.0
    %1916 = vmatpush2.msra.mxu0 0.0
    %1917 = vmatprep.subr.mxu0 0.0
    %1918 = vmatpush2.msra.mxu0 0.0
    %1919 = vmatprep.subr.mxu0 0.0
    %1920 = vmatpush2.msra.mxu0 0.0
    %1921 = vmatprep.subr.mxu0 0.0
    %1922 = vmatpush2.msra.mxu0 0.0
    %1923 = vmatprep.subr.mxu0 0.0
    %1924 = vmatpush2.msra.mxu0 0.0
    %1925 = vmatprep.subr.mxu0 0.0
    %1926 = vmatpush2.msra.mxu0 0.0
    %1927 = vmatprep.subr.mxu0 0.0
    %1928 = vmatpush2.msra.mxu0 0.0
    %1929 = vmatprep.subr.mxu0 0.0
    %1930 = vmatpush2.msra.mxu0 0.0
    %1931 = vmatprep.subr.mxu0 0.0
    %1932 = vmatpush2.msra.mxu0 0.0
    %1933 = vmatprep.subr.mxu0 0.0
    %1934 = vmatpush2.msra.mxu0 0.0
    %1935 = vmatprep.subr.mxu0 0.0
    %1936 = vmatpush2.msra.mxu0 0.0
    %1937 = vmatprep.subr.mxu0 0.0
    %1938 = vmatpush2.msra.mxu0 0.0
    %1939 = vmatprep.subr.mxu0 0.0
    %1940 = vmatpush2.msra.mxu0 0.0
    %1941 = vmatprep.subr.mxu0 0.0
    %1942 = vmatpush2.msra.mxu0 0.0
    %1943 = vmatprep.mubr.f32.mxu0 0.0
    %1944 = vmatmul.mubr.f32.gmra.mxu0 %v1877
    %v1945 = vpop.f32.mrf.mxu0
    %v1946 = vadd.f32 %v1874, %v1945
    %v1947 = vpop.f32.mrf.mxu0
    %1948 = vdwg.mxu0
    %vm1949 = vcmask 254976
    %1950 = vst.msk [vmem:[#allocation11] sm:$0x3] %vm1949, %v1946
    // Predicated region
    $region66: #{feature_extractor_forward.1} parent=1 // pred_check
      _
    $region67: #{feature_extractor_forward.1} parent=1 // pred_check_branch
      %1952 = sbr.rel (0) target = $region69
    $region68: #{feature_extractor_forward.1} parent=1 // pred_region
      _
    $region69: #{feature_extractor_forward.1} parent=1 // pred_fallthru
      _
    // Predicated region
    $region70: #{feature_extractor_forward.1} parent=1 // pred_check
      _
    $region71: #{feature_extractor_forward.1} parent=1 // pred_check_branch
      %1954 = sbr.rel (0) target = $region73
    $region72: #{feature_extractor_forward.1} parent=1 // pred_region
      _
    $region73: #{feature_extractor_forward.1} parent=1 // pred_fallthru
      _
    // Predicated region
    $region74: #{feature_extractor_forward.1} parent=1 // pred_check
      _
    $region75: #{feature_extractor_forward.1} parent=1 // pred_check_branch
      %1956 = sbr.rel (0) target = $region77
    $region76: #{feature_extractor_forward.1} parent=1 // pred_region
      %s1958 = ssub.s32 32, 32
      %1959 = vsyncadd [#allocation4], %s1958
      %s1961 = sshll.u32 [#allocation11], 4
      %s1962 = int_to_ptr.vmem [resolvable:$true] %s1961
      %1964 = dma.vmem_to_hbm [thread:$0]  %s1962, 32, %s13, [#allocation4]
    $region77: #{feature_extractor_forward.1} parent=1 // pred_fallthru
      _
    // Predicated region
    $region78: #{feature_extractor_forward.1} parent=1 // pred_check
      _
    $region79: #{feature_extractor_forward.1} parent=1 // pred_check_branch
      %1966 = sbr.rel (0) target = $region81
    $region80: #{feature_extractor_forward.1} parent=1 // pred_region
      _
    $region81: #{feature_extractor_forward.1} parent=1 // pred_fallthru
      _
    // Predicated region
    $region82: #{feature_extractor_forward.1} parent=1 // pred_check
      _
    $region83: #{feature_extractor_forward.1} parent=1 // pred_check_branch
      %1968 = sbr.rel (0) target = $region85
    $region84: #{feature_extractor_forward.1} parent=1 // pred_region
      _
    $region85: #{feature_extractor_forward.1} parent=1 // pred_fallthru
      _
    // Predicated region
    $region86: #{feature_extractor_forward.1} parent=1 // pred_check
      _
    $region87: #{feature_extractor_forward.1} parent=1 // pred_check_branch
      %1970 = sbr.rel (0) target = $region89
    $region88: #{feature_extractor_forward.1} parent=1 // pred_region
      %1971 = dma.done [#allocation4], 32
    $region89: #{feature_extractor_forward.1} parent=1 // pred_fallthru
      _
    %1972 = vsyncpa [#allocation3], 1
    %1973 = vsyncpa [#allocation6], 1
    %1974 = vsyncpa [#allocation9], 1
    %1975 = vsyncpa [#allocation4], 1

</llo_original>
